<compile_context>
chip_gen: v5e
topology: v5e:2x2
jax: 0.10.0
libtpu: 0.0.40
codegen_flags: <defaults>
</compile_context>

<pallas_src>
import functools

import numpy as np
import jax
import jax.numpy as jnp
from jax import lax
from jax.experimental import pallas as pl
from jax.experimental.pallas import tpu as pltpu


def _static_pow(x, e):
    """x ** e for a static python exponent; exact repeated multiplication for
    integer-valued exponents (matches torch .pow(alpha)/.pow(beta) semantics)."""
    ef = float(e)
    if ef.is_integer() and ef >= 0:
        k = int(ef)
        if k == 0:
            return jnp.ones_like(x)
        result, base = None, x
        while k:
            if k & 1:
                result = base if result is None else result * base
            base = base * base
            k >>= 1
        return result
    return jnp.power(x, ef)


def _assign_kernel(ps_ref, pb_ref, ap_ref, gc_ref, gct_ref, ind_ref,
                   labels_ref, bboxes_ref, scores_ref, maskpos_ref,
                   *, topk, alpha, beta, eps, bg_index,
                   num_gts, num_anchors, num_classes):
    n, L, C = num_gts, num_anchors, num_classes
    f32 = jnp.float32
    HI = lax.Precision.HIGHEST   # keep the one-hot matmul gathers bit-exact

    ps = ps_ref[...]      # (C, L)  predicted class probabilities (transposed)
    pb = pb_ref[...]      # (4, L)  predicted boxes  (x1,y1,x2,y2 rows)
    ap = ap_ref[...]      # (2, L)  anchor centers   (cx,cy rows)
    gc = gc_ref[...]      # (n, 6)  gt [x1,y1,x2,y2,label,pad_mask]
    gct = gct_ref[...]    # (6, n)  same, transposed (for the MXU gather)
    ind = ind_ref[...]    # (C, 1)  class indices with bg_index removed

    px1 = pb[0:1, :]; py1 = pb[1:2, :]; px2 = pb[2:3, :]; py2 = pb[3:4, :]   # (1,L)
    gx1 = gc[:, 0:1]; gy1 = gc[:, 1:2]; gx2 = gc[:, 2:3]; gy2 = gc[:, 3:4]   # (n,1)
    gl_i = gc[:, 4:5].astype(jnp.int32)                                      # (n,1)
    pm = gc[:, 5:6]                                                          # (n,1)

    # ---- iou_similarity(gt_bboxes, pred_bboxes) laid out as (n, L) ----
    ix1 = jnp.maximum(gx1, px1); iy1 = jnp.maximum(gy1, py1)
    ix2 = jnp.minimum(gx2, px2); iy2 = jnp.minimum(gy2, py2)
    overlap = jnp.maximum(ix2 - ix1, 0.0) * jnp.maximum(iy2 - iy1, 0.0)
    area_g = jnp.maximum(gx2 - gx1, 0.0) * jnp.maximum(gy2 - gy1, 0.0)       # (n,1)
    area_p = jnp.maximum(px2 - px1, 0.0) * jnp.maximum(py2 - py1, 0.0)       # (1,L)
    ious = overlap / (area_g + area_p - overlap + 1e-9)                      # (n,L)

    # ---- gather_nd via MXU: bcs[j, l] = pred_scores[l, gt_labels[j]] ----
    iota_C = lax.broadcasted_iota(jnp.int32, (n, C), 1)
    onehot_gl = (gl_i == iota_C).astype(f32)                                 # (n,C)
    bcs = jnp.dot(onehot_gl, ps, precision=HI, preferred_element_type=f32)   # (n,L)

    alignment_metrics = _static_pow(bcs, alpha) * _static_pow(ious, beta)    # (n,L)

    # ---- check_points_inside_bboxes ----
    ax = ap[0:1, :]; ay = ap[1:2, :]
    dmin = jnp.minimum(jnp.minimum(ax - gx1, ay - gy1),
                       jnp.minimum(gx2 - ax, gy2 - ay))
    is_in_gts = (dmin > 1e-9).astype(f32)                                    # (n,L)

    # ---- gather_topk_anchors: top-k per gt over the lane (anchor) axis ----
    metrics = alignment_metrics * is_in_gts
    iota_L = lax.broadcasted_iota(jnp.int32, (n, L), 1)
    iota_n = lax.broadcasted_iota(jnp.int32, (n, L), 0)

    def topk_body(_, carry):
        remaining, selected = carry
        rmax = jnp.max(remaining, axis=1, keepdims=True)                     # (n,1)
        cand = jnp.min(jnp.where(remaining == rmax, iota_L, L),
                       axis=1, keepdims=True)                                # (n,1)
        sel = (iota_L == cand).astype(f32)
        return (jnp.where(sel > 0.0, jnp.float32(-1e30), remaining),
                selected + sel)

    _, selected = lax.fori_loop(0, topk, topk_body,
                                (metrics, jnp.zeros((n, L), f32)),
                                unroll=True)
    is_in_topk = selected * (pm != 0.0).astype(f32)

    mask_positive = is_in_topk * is_in_gts * pm                              # (n,L)
    mps = jnp.sum(mask_positive, axis=0, keepdims=True)                      # (1,L)

    # ---- compute_max_iou_anchor: resolve anchors matched to multiple gts ----
    cmax_iou = jnp.max(ious, axis=0, keepdims=True)
    first_max = jnp.min(jnp.where(ious == cmax_iou, iota_n, n),
                        axis=0, keepdims=True)
    is_max_iou = (iota_n == first_max).astype(f32)
    mask_positive = jnp.where(mps > 1.0, is_max_iou, mask_positive)
    mps = jnp.sum(mask_positive, axis=0, keepdims=True)

    # ---- assigned gt index per anchor (first-max over gts) ----
    rmax = jnp.max(mask_positive, axis=0, keepdims=True)
    assigned_idx = jnp.min(jnp.where(mask_positive == rmax, iota_n, n),
                           axis=0, keepdims=True)                            # (1,L)
    onehot_a = (iota_n == assigned_idx).astype(f32)                          # (n,L)

    # fused bbox + label gather on the MXU: (6,n) @ (n,L) -> (6,L)
    bl = jnp.dot(gct, onehot_a, precision=HI, preferred_element_type=f32)
    bboxes = bl[0:4, :]                                                      # (4,L)
    labels_f = bl[4:5, :]                                                    # (1,L)
    labels_i = (labels_f + 0.5).astype(jnp.int32)
    labels_i = jnp.where(mps > 0.0, labels_i, jnp.int32(bg_index))

    # one_hot(labels, C+1) followed by index_select(ind)  ==  labels == ind[c]
    scores_onehot = (ind == labels_i).astype(f32)                            # (C,L)

    am = alignment_metrics * mask_positive
    max_metrics = jnp.max(am, axis=1, keepdims=True)                         # (n,1)
    max_ious = jnp.max(ious * mask_positive, axis=1, keepdims=True)          # (n,1)
    scale = max_ious / (max_metrics + eps)                                   # (n,1)
    am = am * scale
    metric_per_anchor = jnp.max(am, axis=0, keepdims=True)                   # (1,L)

    labels_ref[...] = labels_i
    bboxes_ref[...] = bboxes
    scores_ref[...] = scores_onehot * metric_per_anchor
    maskpos_ref[...] = mask_positive


def task_aligned_assign(pred_scores, pred_bboxes, anchor_points, num_anchors_list,
                        gt_labels, gt_bboxes, pad_gt_mask, bg_index, gt_scores=None,
                        topk=13, alpha=1.0, beta=6.0, eps=1e-9):
    """JAX/Pallas equivalent of TaskAlignedAssigner.forward (is_close_gt=False)."""
    del gt_scores  # unused by the reference forward
    # TODO(synk): is_close_gt=True variant (stride-gated center distance) not implemented;
    # the module default (check_points_inside_bboxes) is implemented.
    del num_anchors_list
    # TODO(synk): for production anchor counts (L ~ 8400, n ~ 128) tile L with a
    # two-pass per-gt-stats structure to stay inside VMEM on v7x (64 MiB / TC).

    B, L, C = pred_scores.shape
    _, n, _ = gt_bboxes.shape
    if n == 0:
        return (jnp.full((B, L), bg_index, dtype=gt_labels.dtype),
                jnp.zeros((B, L, 4), jnp.float32),
                jnp.zeros((B, L, C), jnp.float32),
                jnp.zeros((B, 1, L), jnp.float32))

    ind = jnp.array([i for i in range(C + 1) if i != bg_index],
                    dtype=jnp.int32)[:, None]                                # (C,1)

    # Lane-dense pre-transposes (anchors on the last axis).
    ps_t = jnp.transpose(pred_scores.astype(jnp.float32), (0, 2, 1))         # (B,C,L)
    pb_t = jnp.transpose(pred_bboxes.astype(jnp.float32), (0, 2, 1))         # (B,4,L)
    ap_t = jnp.transpose(anchor_points.astype(jnp.float32), (1, 0))          # (2,L)
    gcomb = jnp.concatenate([gt_bboxes.astype(jnp.float32),
                             gt_labels.astype(jnp.float32),
                             pad_gt_mask.astype(jnp.float32)], axis=-1)      # (B,n,6)
    gcomb_t = jnp.transpose(gcomb, (0, 2, 1))                                # (B,6,n)

    kernel = functools.partial(
        _assign_kernel, topk=topk, alpha=alpha, beta=beta, eps=eps,
        bg_index=bg_index, num_gts=n, num_anchors=L, num_classes=C)

    out_shape = (
        jax.ShapeDtypeStruct((B, 1, L), jnp.int32),
        jax.ShapeDtypeStruct((B, 4, L), jnp.float32),
        jax.ShapeDtypeStruct((B, C, L), jnp.float32),
        jax.ShapeDtypeStruct((B, n, L), jnp.float32),
    )
    labels, bboxes, scores, maskpos = pl.pallas_call(
        kernel,
        out_shape=out_shape,
        grid=(B,),
        in_specs=[
            pl.BlockSpec((None, C, L), lambda b: (b, 0, 0)),   # pred_scores^T
            pl.BlockSpec((None, 4, L), lambda b: (b, 0, 0)),   # pred_bboxes^T
            pl.BlockSpec((2, L), lambda b: (0, 0)),            # anchor_points^T
            pl.BlockSpec((None, n, 6), lambda b: (b, 0, 0)),   # gt [box,label,pad]
            pl.BlockSpec((None, 6, n), lambda b: (b, 0, 0)),   # gt transposed
            pl.BlockSpec((C, 1), lambda b: (0, 0)),            # kept class indices
        ],
        out_specs=[
            pl.BlockSpec((None, 1, L), lambda b: (b, 0, 0)),
            pl.BlockSpec((None, 4, L), lambda b: (b, 0, 0)),
            pl.BlockSpec((None, C, L), lambda b: (b, 0, 0)),
            pl.BlockSpec((None, n, L), lambda b: (b, 0, 0)),
        ],
        compiler_params=pltpu.CompilerParams(
            dimension_semantics=("parallel",),        # batch items independent (v7x 2 TCs)
            vmem_limit_bytes=32 * 1024 * 1024),
    )(ps_t, pb_t, ap_t, gcomb, gcomb_t, ind)

    assigned_labels = labels[:, 0, :].astype(gt_labels.dtype)                # (B,L)
    assigned_bboxes = jnp.transpose(bboxes, (0, 2, 1))                       # (B,L,4)
    assigned_scores = jnp.transpose(scores, (0, 2, 1))                       # (B,L,C)
    return assigned_labels, assigned_bboxes, assigned_scores, maskpos        # mask (B,n,L)


def _reference(pred_scores, pred_bboxes, anchor_points, gt_labels, gt_bboxes,
               pad_gt_mask, bg_index, topk, alpha, beta, eps):
    """Pure-JAX replica of the PyTorch forward (same math, no Pallas)."""
    B, L, C = pred_scores.shape
    _, n, _ = gt_bboxes.shape
    b1 = gt_bboxes[:, :, None, :]
    b2 = pred_bboxes[:, None, :, :]
    x1 = jnp.maximum(b1[..., 0], b2[..., 0]); y1 = jnp.maximum(b1[..., 1], b2[..., 1])
    x2 = jnp.minimum(b1[..., 2], b2[..., 2]); y2 = jnp.minimum(b1[..., 3], b2[..., 3])
    overlap = jnp.maximum(x2 - x1, 0.0) * jnp.maximum(y2 - y1, 0.0)
    a1 = jnp.maximum(b1[..., 2] - b1[..., 0], 0.0) * jnp.maximum(b1[..., 3] - b1[..., 1], 0.0)
    a2 = jnp.maximum(b2[..., 2] - b2[..., 0], 0.0) * jnp.maximum(b2[..., 3] - b2[..., 1], 0.0)
    ious = overlap / (a1 + a2 - overlap + 1e-9)                       # (B,n,L)

    gl = gt_labels[..., 0].astype(jnp.int32)
    ps_t = jnp.transpose(pred_scores, (0, 2, 1))                      # (B,C,L)
    bcs = jnp.take_along_axis(ps_t, gl[:, :, None], axis=1)           # (B,n,L)
    am = _static_pow(bcs, alpha) * _static_pow(ious, beta)

    x = anchor_points[None, None, :, 0]; y = anchor_points[None, None, :, 1]
    xmin = gt_bboxes[:, :, None, 0]; ymin = gt_bboxes[:, :, None, 1]
    xmax = gt_bboxes[:, :, None, 2]; ymax = gt_bboxes[:, :, None, 3]
    dmin = jnp.minimum(jnp.minimum(x - xmin, y - ymin), jnp.minimum(xmax - x, ymax - y))
    is_in_gts = (dmin > 1e-9).astype(jnp.float32)

    metrics = am * is_in_gts
    _, topk_idxs = lax.top_k(metrics, topk)
    topk_mask = jnp.tile(pad_gt_mask.astype(bool), (1, 1, topk))
    topk_idxs = jnp.where(topk_mask, topk_idxs, 0)
    is_in_topk = jax.nn.one_hot(topk_idxs, L, dtype=jnp.float32).sum(-2)
    is_in_topk = jnp.where(is_in_topk > 1, 0.0, is_in_topk)

    mask_positive = is_in_topk * is_in_gts * pad_gt_mask
    mps = mask_positive.sum(-2)
    is_max_iou = jnp.transpose(
        jax.nn.one_hot(jnp.argmax(ious, axis=-2), n, dtype=jnp.float32), (0, 2, 1))
    mask_positive = jnp.where(mps[:, None, :] > 1, is_max_iou, mask_positive)
    mps = mask_positive.sum(-2)

    assigned_gt_index = jnp.argmax(mask_positive, axis=-2)
    flat_idx = (assigned_gt_index + jnp.arange(B, dtype=jnp.int32)[:, None] * n).reshape(-1)
    assigned_labels = gl.reshape(-1)[flat_idx].reshape(B, L)
    assigned_labels = jnp.where(mps > 0, assigned_labels, bg_index)
    assigned_bboxes = gt_bboxes.reshape(-1, 4)[flat_idx].reshape(B, L, 4)

    one_hot_lab = jax.nn.one_hot(assigned_labels, C + 1, dtype=jnp.float32)
    keep = jnp.array([i for i in range(C + 1) if i != bg_index], dtype=jnp.int32)
    assigned_scores = one_hot_lab[..., keep]

    am2 = am * mask_positive
    max_m = am2.max(-1, keepdims=True)
    max_i = (ious * mask_positive).max(-1, keepdims=True)
    am3 = am2 / (max_m + eps) * max_i
    metric = am3.max(-2)[:, :, None]
    assigned_scores = assigned_scores * metric
    return assigned_labels, assigned_bboxes, assigned_scores, mask_positive


if __name__ == "__main__":
    B, L, C, n = 2, 64, 16, 8
    topk, alpha, beta, eps = 13, 1.0, 6.0, 1e-9
    bg_index = C

    key = jax.random.PRNGKey(0)
    k1, k2, k3, k4, k5, k6 = jax.random.split(key, 6)

    # 8x8 anchor grid with stride 8 ("cxcy" format), L = 64 anchors, one level.
    coords = (jnp.arange(8, dtype=jnp.float32) + 0.5) * 8.0
    yv, xv = jnp.meshgrid(coords, coords, indexing="ij")
    anchor_points = jnp.stack([xv.reshape(-1), yv.reshape(-1)], axis=-1)   # (64, 2)
    num_anchors_list = [L]

    pred_scores = jax.nn.sigmoid(jax.random.normal(k1, (B, L, C), jnp.float32))
    wh = jax.random.uniform(k2, (B, L, 2), jnp.float32, 6.0, 24.0)
    ctr = anchor_points[None] + jax.random.uniform(k3, (B, L, 2), jnp.float32, -4.0, 4.0)
    pred_bboxes = jnp.concatenate([ctr - wh * 0.5, ctr + wh * 0.5], axis=-1)

    gctr = jax.random.uniform(k4, (B, n, 2), jnp.float32, 10.0, 54.0)
    gwh = jax.random.uniform(k5, (B, n, 2), jnp.float32, 8.0, 32.0)
    gt_bboxes = jnp.concatenate([gctr - gwh * 0.5, gctr + gwh * 0.5], axis=-1)
    gt_labels = jax.random.randint(k6, (B, n, 1), 0, C, dtype=jnp.int32)
    num_valid = jnp.array([6, 4], dtype=jnp.int32)
    pad_gt_mask = (jnp.arange(n)[None, :] < num_valid[:, None]).astype(jnp.float32)[..., None]
    gt_bboxes = gt_bboxes * pad_gt_mask      # zero-out padded gt boxes

    outs = task_aligned_assign(pred_scores, pred_bboxes, anchor_points, num_anchors_list,
                               gt_labels, gt_bboxes, pad_gt_mask, bg_index,
                               topk=topk, alpha=alpha, beta=beta, eps=eps)
    outs = jax.block_until_ready(outs)
    labels_k, bboxes_k, scores_k, mask_k = outs

    labels_r, bboxes_r, scores_r, mask_r = _reference(
        pred_scores, pred_bboxes, anchor_points, gt_labels, gt_bboxes, pad_gt_mask,
        bg_index, topk, alpha, beta, eps)

    assert labels_k.shape == (B, L) and bboxes_k.shape == (B, L, 4)
    assert scores_k.shape == (B, L, C) and mask_k.shape == (B, n, L)
    np.testing.assert_array_equal(np.asarray(labels_k), np.asarray(labels_r))
    np.testing.assert_array_equal(np.asarray(mask_k), np.asarray(mask_r))
    np.testing.assert_allclose(np.asarray(bboxes_k), np.asarray(bboxes_r), rtol=1e-6, atol=1e-6)
    np.testing.assert_allclose(np.asarray(scores_k), np.asarray(scores_r), rtol=1e-5, atol=1e-6)

    print("KERNEL_OK")
</pallas_src>

<mosaic_0001>
module attributes {stable_mosaic.version = 11 : i64} {
  func.func @_assign_kernel(%arg0: i32, %arg1: memref<1x16x64xf32, #tpu.memory_space<vmem>>, %arg2: memref<1x4x64xf32, #tpu.memory_space<vmem>>, %arg3: memref<2x64xf32, #tpu.memory_space<vmem>>, %arg4: memref<1x8x6xf32, #tpu.memory_space<vmem>>, %arg5: memref<1x6x8xf32, #tpu.memory_space<vmem>>, %arg6: memref<16x1xi32, #tpu.memory_space<vmem>>, %arg7: memref<1x1x64xi32, #tpu.memory_space<vmem>>, %arg8: memref<1x4x64xf32, #tpu.memory_space<vmem>>, %arg9: memref<1x16x64xf32, #tpu.memory_space<vmem>>, %arg10: memref<1x8x64xf32, #tpu.memory_space<vmem>>) attributes {dimension_semantics = [#tpu.dimension_semantics<parallel>], iteration_bounds = array<i64: 2>, scalar_prefetch = 0 : i64, scratch_operands = 0 : i64, tpu.core_type = #tpu.core_type<tc>, window_params = [{transform_indices = @transform_0, window_bounds = array<i64: 1, 16, 64>}, {transform_indices = @transform_1, window_bounds = array<i64: 1, 4, 64>}, {pipeline_mode = #tpu.pipeline_mode<synchronous>, transform_indices = @transform_2, window_bounds = array<i64: 2, 64>}, {transform_indices = @transform_3, window_bounds = array<i64: 1, 8, 6>}, {transform_indices = @transform_4, window_bounds = array<i64: 1, 6, 8>}, {pipeline_mode = #tpu.pipeline_mode<synchronous>, transform_indices = @transform_5, window_bounds = array<i64: 16, 1>}, {transform_indices = @transform_6, window_bounds = array<i64: 1, 1, 64>}, {transform_indices = @transform_7, window_bounds = array<i64: 1, 4, 64>}, {transform_indices = @transform_8, window_bounds = array<i64: 1, 16, 64>}, {transform_indices = @transform_9, window_bounds = array<i64: 1, 8, 64>}]} {
    %c0 = arith.constant 0 : index
    %c0_0 = arith.constant 0 : index
    %c0_1 = arith.constant 0 : index
    %0 = vector.load %arg1[%c0, %c0_0, %c0_1] : memref<1x16x64xf32, #tpu.memory_space<vmem>>, vector<1x16x64xf32>
    %1 = vector.shape_cast %0 : vector<1x16x64xf32> to vector<16x64xf32>
    %c0_2 = arith.constant 0 : index
    %c0_3 = arith.constant 0 : index
    %c0_4 = arith.constant 0 : index
    %2 = vector.load %arg2[%c0_2, %c0_3, %c0_4] : memref<1x4x64xf32, #tpu.memory_space<vmem>>, vector<1x4x64xf32>
    %3 = vector.shape_cast %2 : vector<1x4x64xf32> to vector<4x64xf32>
    %c0_5 = arith.constant 0 : index
    %c0_6 = arith.constant 0 : index
    %4 = vector.load %arg3[%c0_5, %c0_6] : memref<2x64xf32, #tpu.memory_space<vmem>>, vector<2x64xf32>
    %c0_7 = arith.constant 0 : index
    %c0_8 = arith.constant 0 : index
    %c0_9 = arith.constant 0 : index
    %5 = vector.load %arg4[%c0_7, %c0_8, %c0_9] : memref<1x8x6xf32, #tpu.memory_space<vmem>>, vector<1x8x6xf32>
    %6 = vector.shape_cast %5 : vector<1x8x6xf32> to vector<8x6xf32>
    %c0_10 = arith.constant 0 : index
    %c0_11 = arith.constant 0 : index
    %c0_12 = arith.constant 0 : index
    %7 = vector.load %arg5[%c0_10, %c0_11, %c0_12] : memref<1x6x8xf32, #tpu.memory_space<vmem>>, vector<1x6x8xf32>
    %8 = vector.shape_cast %7 : vector<1x6x8xf32> to vector<6x8xf32>
    %c0_13 = arith.constant 0 : index
    %c0_14 = arith.constant 0 : index
    %9 = vector.load %arg6[%c0_13, %c0_14] : memref<16x1xi32, #tpu.memory_space<vmem>>, vector<16x1xi32>
    %10 = vector.extract_strided_slice %3 {offsets = [0, 0], sizes = [1, 64], strides = [1, 1]} : vector<4x64xf32> to vector<1x64xf32>
    %11 = vector.extract_strided_slice %3 {offsets = [1, 0], sizes = [1, 64], strides = [1, 1]} : vector<4x64xf32> to vector<1x64xf32>
    %12 = vector.extract_strided_slice %3 {offsets = [2, 0], sizes = [1, 64], strides = [1, 1]} : vector<4x64xf32> to vector<1x64xf32>
    %13 = vector.extract_strided_slice %3 {offsets = [3, 0], sizes = [1, 64], strides = [1, 1]} : vector<4x64xf32> to vector<1x64xf32>
    %14 = vector.extract_strided_slice %6 {offsets = [0, 0], sizes = [8, 1], strides = [1, 1]} : vector<8x6xf32> to vector<8x1xf32>
    %15 = vector.extract_strided_slice %6 {offsets = [0, 1], sizes = [8, 1], strides = [1, 1]} : vector<8x6xf32> to vector<8x1xf32>
    %16 = vector.extract_strided_slice %6 {offsets = [0, 2], sizes = [8, 1], strides = [1, 1]} : vector<8x6xf32> to vector<8x1xf32>
    %17 = vector.extract_strided_slice %6 {offsets = [0, 3], sizes = [8, 1], strides = [1, 1]} : vector<8x6xf32> to vector<8x1xf32>
    %18 = vector.extract_strided_slice %6 {offsets = [0, 4], sizes = [8, 1], strides = [1, 1]} : vector<8x6xf32> to vector<8x1xf32>
    %19 = arith.fptosi %18 : vector<8x1xf32> to vector<8x1xi32>
    %20 = vector.extract_strided_slice %6 {offsets = [0, 5], sizes = [8, 1], strides = [1, 1]} : vector<8x6xf32> to vector<8x1xf32>
    %21 = vector.broadcast %14 : vector<8x1xf32> to vector<8x64xf32>
    %22 = vector.broadcast %10 : vector<1x64xf32> to vector<8x64xf32>
    %23 = arith.maximumf %21, %22 : vector<8x64xf32>
    %24 = vector.broadcast %15 : vector<8x1xf32> to vector<8x64xf32>
    %25 = vector.broadcast %11 : vector<1x64xf32> to vector<8x64xf32>
    %26 = arith.maximumf %24, %25 : vector<8x64xf32>
    %27 = vector.broadcast %16 : vector<8x1xf32> to vector<8x64xf32>
    %28 = vector.broadcast %12 : vector<1x64xf32> to vector<8x64xf32>
    %29 = arith.minimumf %27, %28 : vector<8x64xf32>
    %30 = vector.broadcast %17 : vector<8x1xf32> to vector<8x64xf32>
    %31 = vector.broadcast %13 : vector<1x64xf32> to vector<8x64xf32>
    %32 = arith.minimumf %30, %31 : vector<8x64xf32>
    %33 = arith.subf %29, %23 : vector<8x64xf32>
    %cst = arith.constant 0.000000e+00 : f32
    %34 = vector.broadcast %cst : f32 to vector<8x64xf32>
    %35 = arith.maximumf %33, %34 : vector<8x64xf32>
    %36 = arith.subf %32, %26 : vector<8x64xf32>
    %cst_15 = arith.constant 0.000000e+00 : f32
    %37 = vector.broadcast %cst_15 : f32 to vector<8x64xf32>
    %38 = arith.maximumf %36, %37 : vector<8x64xf32>
    %39 = arith.mulf %35, %38 : vector<8x64xf32>
    %40 = arith.subf %16, %14 : vector<8x1xf32>
    %cst_16 = arith.constant 0.000000e+00 : f32
    %41 = vector.broadcast %cst_16 : f32 to vector<8x1xf32>
    %42 = arith.maximumf %40, %41 : vector<8x1xf32>
    %43 = arith.subf %17, %15 : vector<8x1xf32>
    %cst_17 = arith.constant 0.000000e+00 : f32
    %44 = vector.broadcast %cst_17 : f32 to vector<8x1xf32>
    %45 = arith.maximumf %43, %44 : vector<8x1xf32>
    %46 = arith.mulf %42, %45 : vector<8x1xf32>
    %47 = arith.subf %12, %10 : vector<1x64xf32>
    %cst_18 = arith.constant 0.000000e+00 : f32
    %48 = vector.broadcast %cst_18 : f32 to vector<1x64xf32>
    %49 = arith.maximumf %47, %48 : vector<1x64xf32>
    %50 = arith.subf %13, %11 : vector<1x64xf32>
    %cst_19 = arith.constant 0.000000e+00 : f32
    %51 = vector.broadcast %cst_19 : f32 to vector<1x64xf32>
    %52 = arith.maximumf %50, %51 : vector<1x64xf32>
    %53 = arith.mulf %49, %52 : vector<1x64xf32>
    %54 = vector.broadcast %46 : vector<8x1xf32> to vector<8x64xf32>
    %55 = vector.broadcast %53 : vector<1x64xf32> to vector<8x64xf32>
    %56 = arith.addf %54, %55 : vector<8x64xf32>
    %57 = arith.subf %56, %39 : vector<8x64xf32>
    %cst_20 = arith.constant 9.99999971E-10 : f32
    %58 = vector.broadcast %cst_20 : f32 to vector<8x64xf32>
    %59 = arith.addf %57, %58 : vector<8x64xf32>
    %60 = arith.divf %39, %59 : vector<8x64xf32>
    %61 = tpu.iota {dimensions = array<i32: 1>} : vector<8x16xi32>
    %62 = vector.broadcast %19 : vector<8x1xi32> to vector<8x16xi32>
    %63 = arith.cmpi eq, %62, %61 : vector<8x16xi32>
    %64 = arith.extui %63 : vector<8x16xi1> to vector<8x16xi32>
    %65 = arith.sitofp %64 : vector<8x16xi32> to vector<8x16xf32>
    %cst_21 = arith.constant dense<0.000000e+00> : vector<8x64xf32>
    %66 = tpu.matmul %65, %1, %cst_21 {dimension_numbers = #tpu.dot_dimension_numbers<[1], [0], [0], [1], [0, 0, 1, 1], [], []>, precision = #tpu.contract_precision<fp32>} : vector<8x16xf32>, vector<16x64xf32>, vector<8x64xf32> -> vector<8x64xf32>
    %67 = arith.mulf %60, %60 : vector<8x64xf32>
    %68 = arith.mulf %67, %67 : vector<8x64xf32>
    %69 = arith.mulf %67, %68 : vector<8x64xf32>
    %70 = arith.mulf %66, %69 : vector<8x64xf32>
    %71 = vector.extract_strided_slice %4 {offsets = [0, 0], sizes = [1, 64], strides = [1, 1]} : vector<2x64xf32> to vector<1x64xf32>
    %72 = vector.extract_strided_slice %4 {offsets = [1, 0], sizes = [1, 64], strides = [1, 1]} : vector<2x64xf32> to vector<1x64xf32>
    %73 = vector.broadcast %71 : vector<1x64xf32> to vector<8x64xf32>
    %74 = vector.broadcast %14 : vector<8x1xf32> to vector<8x64xf32>
    %75 = arith.subf %73, %74 : vector<8x64xf32>
    %76 = vector.broadcast %72 : vector<1x64xf32> to vector<8x64xf32>
    %77 = vector.broadcast %15 : vector<8x1xf32> to vector<8x64xf32>
    %78 = arith.subf %76, %77 : vector<8x64xf32>
    %79 = arith.minimumf %75, %78 : vector<8x64xf32>
    %80 = vector.broadcast %16 : vector<8x1xf32> to vector<8x64xf32>
    %81 = vector.broadcast %71 : vector<1x64xf32> to vector<8x64xf32>
    %82 = arith.subf %80, %81 : vector<8x64xf32>
    %83 = vector.broadcast %17 : vector<8x1xf32> to vector<8x64xf32>
    %84 = vector.broadcast %72 : vector<1x64xf32> to vector<8x64xf32>
    %85 = arith.subf %83, %84 : vector<8x64xf32>
    %86 = arith.minimumf %82, %85 : vector<8x64xf32>
    %87 = arith.minimumf %79, %86 : vector<8x64xf32>
    %cst_22 = arith.constant 9.99999971E-10 : f32
    %88 = vector.broadcast %cst_22 : f32 to vector<8x64xf32>
    %89 = arith.cmpf ogt, %87, %88 : vector<8x64xf32>
    %90 = arith.extui %89 : vector<8x64xi1> to vector<8x64xi32>
    %91 = arith.sitofp %90 : vector<8x64xi32> to vector<8x64xf32>
    %92 = arith.mulf %70, %91 : vector<8x64xf32>
    %93 = tpu.iota {dimensions = array<i32: 1>} : vector<8x64xi32>
    %94 = tpu.iota {dimensions = array<i32: 0>} : vector<8x64xi32>
    %cst_23 = arith.constant 0.000000e+00 : f32
    %95 = vector.broadcast %cst_23 : f32 to vector<8x64xf32>
    %c0_i32 = arith.constant 0 : i32
    %cst_24 = arith.constant dense<0xFF800000> : vector<8xf32>
    %96 = vector.multi_reduction <maximumf>, %92, %cst_24 [1] : vector<8x64xf32> to vector<8xf32>
    %97 = vector.shape_cast %96 : vector<8xf32> to vector<8x1xf32>
    %98 = vector.broadcast %97 : vector<8x1xf32> to vector<8x64xf32>
    %99 = arith.cmpf oeq, %92, %98 : vector<8x64xf32>
    %c64_i32 = arith.constant 64 : i32
    %100 = vector.broadcast %c64_i32 : i32 to vector<8x64xi32>
    %101 = arith.select %99, %93, %100 : vector<8x64xi1>, vector<8x64xi32>
    %cst_25 = arith.constant dense<2147483647> : vector<8xi32>
    %102 = vector.multi_reduction <minsi>, %101, %cst_25 [1] : vector<8x64xi32> to vector<8xi32>
    %103 = vector.shape_cast %102 : vector<8xi32> to vector<8x1xi32>
    %104 = vector.broadcast %103 : vector<8x1xi32> to vector<8x64xi32>
    %105 = arith.cmpi eq, %93, %104 : vector<8x64xi32>
    %106 = arith.extui %105 : vector<8x64xi1> to vector<8x64xi32>
    %107 = arith.sitofp %106 : vector<8x64xi32> to vector<8x64xf32>
    %cst_26 = arith.constant 0.000000e+00 : f32
    %108 = vector.broadcast %cst_26 : f32 to vector<8x64xf32>
    %109 = arith.cmpf ogt, %107, %108 : vector<8x64xf32>
    %cst_27 = arith.constant -1.000000e+30 : f32
    %110 = vector.broadcast %cst_27 : f32 to vector<8x64xf32>
    %111 = arith.select %109, %110, %92 : vector<8x64xi1>, vector<8x64xf32>
    %112 = arith.addf %95, %107 : vector<8x64xf32>
    %c1_i32 = arith.constant 1 : i32
    %cst_28 = arith.constant dense<0xFF800000> : vector<8xf32>
    %113 = vector.multi_reduction <maximumf>, %111, %cst_28 [1] : vector<8x64xf32> to vector<8xf32>
    %114 = vector.shape_cast %113 : vector<8xf32> to vector<8x1xf32>
    %115 = vector.broadcast %114 : vector<8x1xf32> to vector<8x64xf32>
    %116 = arith.cmpf oeq, %111, %115 : vector<8x64xf32>
    %c64_i32_29 = arith.constant 64 : i32
    %117 = vector.broadcast %c64_i32_29 : i32 to vector<8x64xi32>
    %118 = arith.select %116, %93, %117 : vector<8x64xi1>, vector<8x64xi32>
    %cst_30 = arith.constant dense<2147483647> : vector<8xi32>
    %119 = vector.multi_reduction <minsi>, %118, %cst_30 [1] : vector<8x64xi32> to vector<8xi32>
    %120 = vector.shape_cast %119 : vector<8xi32> to vector<8x1xi32>
    %121 = vector.broadcast %120 : vector<8x1xi32> to vector<8x64xi32>
    %122 = arith.cmpi eq, %93, %121 : vector<8x64xi32>
    %123 = arith.extui %122 : vector<8x64xi1> to vector<8x64xi32>
    %124 = arith.sitofp %123 : vector<8x64xi32> to vector<8x64xf32>
    %cst_31 = arith.constant 0.000000e+00 : f32
    %125 = vector.broadcast %cst_31 : f32 to vector<8x64xf32>
    %126 = arith.cmpf ogt, %124, %125 : vector<8x64xf32>
    %cst_32 = arith.constant -1.000000e+30 : f32
    %127 = vector.broadcast %cst_32 : f32 to vector<8x64xf32>
    %128 = arith.select %126, %127, %111 : vector<8x64xi1>, vector<8x64xf32>
    %129 = arith.addf %112, %124 : vector<8x64xf32>
    %c2_i32 = arith.constant 2 : i32
    %cst_33 = arith.constant dense<0xFF800000> : vector<8xf32>
    %130 = vector.multi_reduction <maximumf>, %128, %cst_33 [1] : vector<8x64xf32> to vector<8xf32>
    %131 = vector.shape_cast %130 : vector<8xf32> to vector<8x1xf32>
    %132 = vector.broadcast %131 : vector<8x1xf32> to vector<8x64xf32>
    %133 = arith.cmpf oeq, %128, %132 : vector<8x64xf32>
    %c64_i32_34 = arith.constant 64 : i32
    %134 = vector.broadcast %c64_i32_34 : i32 to vector<8x64xi32>
    %135 = arith.select %133, %93, %134 : vector<8x64xi1>, vector<8x64xi32>
    %cst_35 = arith.constant dense<2147483647> : vector<8xi32>
    %136 = vector.multi_reduction <minsi>, %135, %cst_35 [1] : vector<8x64xi32> to vector<8xi32>
    %137 = vector.shape_cast %136 : vector<8xi32> to vector<8x1xi32>
    %138 = vector.broadcast %137 : vector<8x1xi32> to vector<8x64xi32>
    %139 = arith.cmpi eq, %93, %138 : vector<8x64xi32>
    %140 = arith.extui %139 : vector<8x64xi1> to vector<8x64xi32>
    %141 = arith.sitofp %140 : vector<8x64xi32> to vector<8x64xf32>
    %cst_36 = arith.constant 0.000000e+00 : f32
    %142 = vector.broadcast %cst_36 : f32 to vector<8x64xf32>
    %143 = arith.cmpf ogt, %141, %142 : vector<8x64xf32>
    %cst_37 = arith.constant -1.000000e+30 : f32
    %144 = vector.broadcast %cst_37 : f32 to vector<8x64xf32>
    %145 = arith.select %143, %144, %128 : vector<8x64xi1>, vector<8x64xf32>
    %146 = arith.addf %129, %141 : vector<8x64xf32>
    %c3_i32 = arith.constant 3 : i32
    %cst_38 = arith.constant dense<0xFF800000> : vector<8xf32>
    %147 = vector.multi_reduction <maximumf>, %145, %cst_38 [1] : vector<8x64xf32> to vector<8xf32>
    %148 = vector.shape_cast %147 : vector<8xf32> to vector<8x1xf32>
    %149 = vector.broadcast %148 : vector<8x1xf32> to vector<8x64xf32>
    %150 = arith.cmpf oeq, %145, %149 : vector<8x64xf32>
    %c64_i32_39 = arith.constant 64 : i32
    %151 = vector.broadcast %c64_i32_39 : i32 to vector<8x64xi32>
    %152 = arith.select %150, %93, %151 : vector<8x64xi1>, vector<8x64xi32>
    %cst_40 = arith.constant dense<2147483647> : vector<8xi32>
    %153 = vector.multi_reduction <minsi>, %152, %cst_40 [1] : vector<8x64xi32> to vector<8xi32>
    %154 = vector.shape_cast %153 : vector<8xi32> to vector<8x1xi32>
    %155 = vector.broadcast %154 : vector<8x1xi32> to vector<8x64xi32>
    %156 = arith.cmpi eq, %93, %155 : vector<8x64xi32>
    %157 = arith.extui %156 : vector<8x64xi1> to vector<8x64xi32>
    %158 = arith.sitofp %157 : vector<8x64xi32> to vector<8x64xf32>
    %cst_41 = arith.constant 0.000000e+00 : f32
    %159 = vector.broadcast %cst_41 : f32 to vector<8x64xf32>
    %160 = arith.cmpf ogt, %158, %159 : vector<8x64xf32>
    %cst_42 = arith.constant -1.000000e+30 : f32
    %161 = vector.broadcast %cst_42 : f32 to vector<8x64xf32>
    %162 = arith.select %160, %161, %145 : vector<8x64xi1>, vector<8x64xf32>
    %163 = arith.addf %146, %158 : vector<8x64xf32>
    %c4_i32 = arith.constant 4 : i32
    %cst_43 = arith.constant dense<0xFF800000> : vector<8xf32>
    %164 = vector.multi_reduction <maximumf>, %162, %cst_43 [1] : vector<8x64xf32> to vector<8xf32>
    %165 = vector.shape_cast %164 : vector<8xf32> to vector<8x1xf32>
    %166 = vector.broadcast %165 : vector<8x1xf32> to vector<8x64xf32>
    %167 = arith.cmpf oeq, %162, %166 : vector<8x64xf32>
    %c64_i32_44 = arith.constant 64 : i32
    %168 = vector.broadcast %c64_i32_44 : i32 to vector<8x64xi32>
    %169 = arith.select %167, %93, %168 : vector<8x64xi1>, vector<8x64xi32>
    %cst_45 = arith.constant dense<2147483647> : vector<8xi32>
    %170 = vector.multi_reduction <minsi>, %169, %cst_45 [1] : vector<8x64xi32> to vector<8xi32>
    %171 = vector.shape_cast %170 : vector<8xi32> to vector<8x1xi32>
    %172 = vector.broadcast %171 : vector<8x1xi32> to vector<8x64xi32>
    %173 = arith.cmpi eq, %93, %172 : vector<8x64xi32>
    %174 = arith.extui %173 : vector<8x64xi1> to vector<8x64xi32>
    %175 = arith.sitofp %174 : vector<8x64xi32> to vector<8x64xf32>
    %cst_46 = arith.constant 0.000000e+00 : f32
    %176 = vector.broadcast %cst_46 : f32 to vector<8x64xf32>
    %177 = arith.cmpf ogt, %175, %176 : vector<8x64xf32>
    %cst_47 = arith.constant -1.000000e+30 : f32
    %178 = vector.broadcast %cst_47 : f32 to vector<8x64xf32>
    %179 = arith.select %177, %178, %162 : vector<8x64xi1>, vector<8x64xf32>
    %180 = arith.addf %163, %175 : vector<8x64xf32>
    %c5_i32 = arith.constant 5 : i32
    %cst_48 = arith.constant dense<0xFF800000> : vector<8xf32>
    %181 = vector.multi_reduction <maximumf>, %179, %cst_48 [1] : vector<8x64xf32> to vector<8xf32>
    %182 = vector.shape_cast %181 : vector<8xf32> to vector<8x1xf32>
    %183 = vector.broadcast %182 : vector<8x1xf32> to vector<8x64xf32>
    %184 = arith.cmpf oeq, %179, %183 : vector<8x64xf32>
    %c64_i32_49 = arith.constant 64 : i32
    %185 = vector.broadcast %c64_i32_49 : i32 to vector<8x64xi32>
    %186 = arith.select %184, %93, %185 : vector<8x64xi1>, vector<8x64xi32>
    %cst_50 = arith.constant dense<2147483647> : vector<8xi32>
    %187 = vector.multi_reduction <minsi>, %186, %cst_50 [1] : vector<8x64xi32> to vector<8xi32>
    %188 = vector.shape_cast %187 : vector<8xi32> to vector<8x1xi32>
    %189 = vector.broadcast %188 : vector<8x1xi32> to vector<8x64xi32>
    %190 = arith.cmpi eq, %93, %189 : vector<8x64xi32>
    %191 = arith.extui %190 : vector<8x64xi1> to vector<8x64xi32>
    %192 = arith.sitofp %191 : vector<8x64xi32> to vector<8x64xf32>
    %cst_51 = arith.constant 0.000000e+00 : f32
    %193 = vector.broadcast %cst_51 : f32 to vector<8x64xf32>
    %194 = arith.cmpf ogt, %192, %193 : vector<8x64xf32>
    %cst_52 = arith.constant -1.000000e+30 : f32
    %195 = vector.broadcast %cst_52 : f32 to vector<8x64xf32>
    %196 = arith.select %194, %195, %179 : vector<8x64xi1>, vector<8x64xf32>
    %197 = arith.addf %180, %192 : vector<8x64xf32>
    %c6_i32 = arith.constant 6 : i32
    %cst_53 = arith.constant dense<0xFF800000> : vector<8xf32>
    %198 = vector.multi_reduction <maximumf>, %196, %cst_53 [1] : vector<8x64xf32> to vector<8xf32>
    %199 = vector.shape_cast %198 : vector<8xf32> to vector<8x1xf32>
    %200 = vector.broadcast %199 : vector<8x1xf32> to vector<8x64xf32>
    %201 = arith.cmpf oeq, %196, %200 : vector<8x64xf32>
    %c64_i32_54 = arith.constant 64 : i32
    %202 = vector.broadcast %c64_i32_54 : i32 to vector<8x64xi32>
    %203 = arith.select %201, %93, %202 : vector<8x64xi1>, vector<8x64xi32>
    %cst_55 = arith.constant dense<2147483647> : vector<8xi32>
    %204 = vector.multi_reduction <minsi>, %203, %cst_55 [1] : vector<8x64xi32> to vector<8xi32>
    %205 = vector.shape_cast %204 : vector<8xi32> to vector<8x1xi32>
    %206 = vector.broadcast %205 : vector<8x1xi32> to vector<8x64xi32>
    %207 = arith.cmpi eq, %93, %206 : vector<8x64xi32>
    %208 = arith.extui %207 : vector<8x64xi1> to vector<8x64xi32>
    %209 = arith.sitofp %208 : vector<8x64xi32> to vector<8x64xf32>
    %cst_56 = arith.constant 0.000000e+00 : f32
    %210 = vector.broadcast %cst_56 : f32 to vector<8x64xf32>
    %211 = arith.cmpf ogt, %209, %210 : vector<8x64xf32>
    %cst_57 = arith.constant -1.000000e+30 : f32
    %212 = vector.broadcast %cst_57 : f32 to vector<8x64xf32>
    %213 = arith.select %211, %212, %196 : vector<8x64xi1>, vector<8x64xf32>
    %214 = arith.addf %197, %209 : vector<8x64xf32>
    %c7_i32 = arith.constant 7 : i32
    %cst_58 = arith.constant dense<0xFF800000> : vector<8xf32>
    %215 = vector.multi_reduction <maximumf>, %213, %cst_58 [1] : vector<8x64xf32> to vector<8xf32>
    %216 = vector.shape_cast %215 : vector<8xf32> to vector<8x1xf32>
    %217 = vector.broadcast %216 : vector<8x1xf32> to vector<8x64xf32>
    %218 = arith.cmpf oeq, %213, %217 : vector<8x64xf32>
    %c64_i32_59 = arith.constant 64 : i32
    %219 = vector.broadcast %c64_i32_59 : i32 to vector<8x64xi32>
    %220 = arith.select %218, %93, %219 : vector<8x64xi1>, vector<8x64xi32>
    %cst_60 = arith.constant dense<2147483647> : vector<8xi32>
    %221 = vector.multi_reduction <minsi>, %220, %cst_60 [1] : vector<8x64xi32> to vector<8xi32>
    %222 = vector.shape_cast %221 : vector<8xi32> to vector<8x1xi32>
    %223 = vector.broadcast %222 : vector<8x1xi32> to vector<8x64xi32>
    %224 = arith.cmpi eq, %93, %223 : vector<8x64xi32>
    %225 = arith.extui %224 : vector<8x64xi1> to vector<8x64xi32>
    %226 = arith.sitofp %225 : vector<8x64xi32> to vector<8x64xf32>
    %cst_61 = arith.constant 0.000000e+00 : f32
    %227 = vector.broadcast %cst_61 : f32 to vector<8x64xf32>
    %228 = arith.cmpf ogt, %226, %227 : vector<8x64xf32>
    %cst_62 = arith.constant -1.000000e+30 : f32
    %229 = vector.broadcast %cst_62 : f32 to vector<8x64xf32>
    %230 = arith.select %228, %229, %213 : vector<8x64xi1>, vector<8x64xf32>
    %231 = arith.addf %214, %226 : vector<8x64xf32>
    %c8_i32 = arith.constant 8 : i32
    %cst_63 = arith.constant dense<0xFF800000> : vector<8xf32>
    %232 = vector.multi_reduction <maximumf>, %230, %cst_63 [1] : vector<8x64xf32> to vector<8xf32>
    %233 = vector.shape_cast %232 : vector<8xf32> to vector<8x1xf32>
    %234 = vector.broadcast %233 : vector<8x1xf32> to vector<8x64xf32>
    %235 = arith.cmpf oeq, %230, %234 : vector<8x64xf32>
    %c64_i32_64 = arith.constant 64 : i32
    %236 = vector.broadcast %c64_i32_64 : i32 to vector<8x64xi32>
    %237 = arith.select %235, %93, %236 : vector<8x64xi1>, vector<8x64xi32>
    %cst_65 = arith.constant dense<2147483647> : vector<8xi32>
    %238 = vector.multi_reduction <minsi>, %237, %cst_65 [1] : vector<8x64xi32> to vector<8xi32>
    %239 = vector.shape_cast %238 : vector<8xi32> to vector<8x1xi32>
    %240 = vector.broadcast %239 : vector<8x1xi32> to vector<8x64xi32>
    %241 = arith.cmpi eq, %93, %240 : vector<8x64xi32>
    %242 = arith.extui %241 : vector<8x64xi1> to vector<8x64xi32>
    %243 = arith.sitofp %242 : vector<8x64xi32> to vector<8x64xf32>
    %cst_66 = arith.constant 0.000000e+00 : f32
    %244 = vector.broadcast %cst_66 : f32 to vector<8x64xf32>
    %245 = arith.cmpf ogt, %243, %244 : vector<8x64xf32>
    %cst_67 = arith.constant -1.000000e+30 : f32
    %246 = vector.broadcast %cst_67 : f32 to vector<8x64xf32>
    %247 = arith.select %245, %246, %230 : vector<8x64xi1>, vector<8x64xf32>
    %248 = arith.addf %231, %243 : vector<8x64xf32>
    %c9_i32 = arith.constant 9 : i32
    %cst_68 = arith.constant dense<0xFF800000> : vector<8xf32>
    %249 = vector.multi_reduction <maximumf>, %247, %cst_68 [1] : vector<8x64xf32> to vector<8xf32>
    %250 = vector.shape_cast %249 : vector<8xf32> to vector<8x1xf32>
    %251 = vector.broadcast %250 : vector<8x1xf32> to vector<8x64xf32>
    %252 = arith.cmpf oeq, %247, %251 : vector<8x64xf32>
    %c64_i32_69 = arith.constant 64 : i32
    %253 = vector.broadcast %c64_i32_69 : i32 to vector<8x64xi32>
    %254 = arith.select %252, %93, %253 : vector<8x64xi1>, vector<8x64xi32>
    %cst_70 = arith.constant dense<2147483647> : vector<8xi32>
    %255 = vector.multi_reduction <minsi>, %254, %cst_70 [1] : vector<8x64xi32> to vector<8xi32>
    %256 = vector.shape_cast %255 : vector<8xi32> to vector<8x1xi32>
    %257 = vector.broadcast %256 : vector<8x1xi32> to vector<8x64xi32>
    %258 = arith.cmpi eq, %93, %257 : vector<8x64xi32>
    %259 = arith.extui %258 : vector<8x64xi1> to vector<8x64xi32>
    %260 = arith.sitofp %259 : vector<8x64xi32> to vector<8x64xf32>
    %cst_71 = arith.constant 0.000000e+00 : f32
    %261 = vector.broadcast %cst_71 : f32 to vector<8x64xf32>
    %262 = arith.cmpf ogt, %260, %261 : vector<8x64xf32>
    %cst_72 = arith.constant -1.000000e+30 : f32
    %263 = vector.broadcast %cst_72 : f32 to vector<8x64xf32>
    %264 = arith.select %262, %263, %247 : vector<8x64xi1>, vector<8x64xf32>
    %265 = arith.addf %248, %260 : vector<8x64xf32>
    %c10_i32 = arith.constant 10 : i32
    %cst_73 = arith.constant dense<0xFF800000> : vector<8xf32>
    %266 = vector.multi_reduction <maximumf>, %264, %cst_73 [1] : vector<8x64xf32> to vector<8xf32>
    %267 = vector.shape_cast %266 : vector<8xf32> to vector<8x1xf32>
    %268 = vector.broadcast %267 : vector<8x1xf32> to vector<8x64xf32>
    %269 = arith.cmpf oeq, %264, %268 : vector<8x64xf32>
    %c64_i32_74 = arith.constant 64 : i32
    %270 = vector.broadcast %c64_i32_74 : i32 to vector<8x64xi32>
    %271 = arith.select %269, %93, %270 : vector<8x64xi1>, vector<8x64xi32>
    %cst_75 = arith.constant dense<2147483647> : vector<8xi32>
    %272 = vector.multi_reduction <minsi>, %271, %cst_75 [1] : vector<8x64xi32> to vector<8xi32>
    %273 = vector.shape_cast %272 : vector<8xi32> to vector<8x1xi32>
    %274 = vector.broadcast %273 : vector<8x1xi32> to vector<8x64xi32>
    %275 = arith.cmpi eq, %93, %274 : vector<8x64xi32>
    %276 = arith.extui %275 : vector<8x64xi1> to vector<8x64xi32>
    %277 = arith.sitofp %276 : vector<8x64xi32> to vector<8x64xf32>
    %cst_76 = arith.constant 0.000000e+00 : f32
    %278 = vector.broadcast %cst_76 : f32 to vector<8x64xf32>
    %279 = arith.cmpf ogt, %277, %278 : vector<8x64xf32>
    %cst_77 = arith.constant -1.000000e+30 : f32
    %280 = vector.broadcast %cst_77 : f32 to vector<8x64xf32>
    %281 = arith.select %279, %280, %264 : vector<8x64xi1>, vector<8x64xf32>
    %282 = arith.addf %265, %277 : vector<8x64xf32>
    %c11_i32 = arith.constant 11 : i32
    %cst_78 = arith.constant dense<0xFF800000> : vector<8xf32>
    %283 = vector.multi_reduction <maximumf>, %281, %cst_78 [1] : vector<8x64xf32> to vector<8xf32>
    %284 = vector.shape_cast %283 : vector<8xf32> to vector<8x1xf32>
    %285 = vector.broadcast %284 : vector<8x1xf32> to vector<8x64xf32>
    %286 = arith.cmpf oeq, %281, %285 : vector<8x64xf32>
    %c64_i32_79 = arith.constant 64 : i32
    %287 = vector.broadcast %c64_i32_79 : i32 to vector<8x64xi32>
    %288 = arith.select %286, %93, %287 : vector<8x64xi1>, vector<8x64xi32>
    %cst_80 = arith.constant dense<2147483647> : vector<8xi32>
    %289 = vector.multi_reduction <minsi>, %288, %cst_80 [1] : vector<8x64xi32> to vector<8xi32>
    %290 = vector.shape_cast %289 : vector<8xi32> to vector<8x1xi32>
    %291 = vector.broadcast %290 : vector<8x1xi32> to vector<8x64xi32>
    %292 = arith.cmpi eq, %93, %291 : vector<8x64xi32>
    %293 = arith.extui %292 : vector<8x64xi1> to vector<8x64xi32>
    %294 = arith.sitofp %293 : vector<8x64xi32> to vector<8x64xf32>
    %cst_81 = arith.constant 0.000000e+00 : f32
    %295 = vector.broadcast %cst_81 : f32 to vector<8x64xf32>
    %296 = arith.cmpf ogt, %294, %295 : vector<8x64xf32>
    %cst_82 = arith.constant -1.000000e+30 : f32
    %297 = vector.broadcast %cst_82 : f32 to vector<8x64xf32>
    %298 = arith.select %296, %297, %281 : vector<8x64xi1>, vector<8x64xf32>
    %299 = arith.addf %282, %294 : vector<8x64xf32>
    %c12_i32 = arith.constant 12 : i32
    %cst_83 = arith.constant dense<0xFF800000> : vector<8xf32>
    %300 = vector.multi_reduction <maximumf>, %298, %cst_83 [1] : vector<8x64xf32> to vector<8xf32>
    %301 = vector.shape_cast %300 : vector<8xf32> to vector<8x1xf32>
    %302 = vector.broadcast %301 : vector<8x1xf32> to vector<8x64xf32>
    %303 = arith.cmpf oeq, %298, %302 : vector<8x64xf32>
    %c64_i32_84 = arith.constant 64 : i32
    %304 = vector.broadcast %c64_i32_84 : i32 to vector<8x64xi32>
    %305 = arith.select %303, %93, %304 : vector<8x64xi1>, vector<8x64xi32>
    %cst_85 = arith.constant dense<2147483647> : vector<8xi32>
    %306 = vector.multi_reduction <minsi>, %305, %cst_85 [1] : vector<8x64xi32> to vector<8xi32>
    %307 = vector.shape_cast %306 : vector<8xi32> to vector<8x1xi32>
    %308 = vector.broadcast %307 : vector<8x1xi32> to vector<8x64xi32>
    %309 = arith.cmpi eq, %93, %308 : vector<8x64xi32>
    %310 = arith.extui %309 : vector<8x64xi1> to vector<8x64xi32>
    %311 = arith.sitofp %310 : vector<8x64xi32> to vector<8x64xf32>
    %cst_86 = arith.constant 0.000000e+00 : f32
    %312 = vector.broadcast %cst_86 : f32 to vector<8x64xf32>
    %313 = arith.cmpf ogt, %311, %312 : vector<8x64xf32>
    %cst_87 = arith.constant -1.000000e+30 : f32
    %314 = vector.broadcast %cst_87 : f32 to vector<8x64xf32>
    %315 = arith.select %313, %314, %298 : vector<8x64xi1>, vector<8x64xf32>
    %316 = arith.addf %299, %311 : vector<8x64xf32>
    %cst_88 = arith.constant 0.000000e+00 : f32
    %317 = vector.broadcast %cst_88 : f32 to vector<8x1xf32>
    %318 = arith.cmpf one, %20, %317 : vector<8x1xf32>
    %319 = arith.extui %318 : vector<8x1xi1> to vector<8x1xi32>
    %320 = arith.sitofp %319 : vector<8x1xi32> to vector<8x1xf32>
    %321 = vector.broadcast %320 : vector<8x1xf32> to vector<8x64xf32>
    %322 = arith.mulf %316, %321 : vector<8x64xf32>
    %323 = arith.mulf %322, %91 : vector<8x64xf32>
    %324 = vector.broadcast %20 : vector<8x1xf32> to vector<8x64xf32>
    %325 = arith.mulf %323, %324 : vector<8x64xf32>
    %cst_89 = arith.constant dense<0.000000e+00> : vector<64xf32>
    %326 = vector.multi_reduction <add>, %325, %cst_89 [0] : vector<8x64xf32> to vector<64xf32>
    %327 = vector.shape_cast %326 : vector<64xf32> to vector<1x64xf32>
    %cst_90 = arith.constant dense<0xFF800000> : vector<64xf32>
    %328 = vector.multi_reduction <maximumf>, %60, %cst_90 [0] : vector<8x64xf32> to vector<64xf32>
    %329 = vector.shape_cast %328 : vector<64xf32> to vector<1x64xf32>
    %330 = vector.broadcast %329 : vector<1x64xf32> to vector<8x64xf32>
    %331 = arith.cmpf oeq, %60, %330 : vector<8x64xf32>
    %c8_i32_91 = arith.constant 8 : i32
    %332 = vector.broadcast %c8_i32_91 : i32 to vector<8x64xi32>
    %333 = arith.select %331, %94, %332 : vector<8x64xi1>, vector<8x64xi32>
    %cst_92 = arith.constant dense<2147483647> : vector<64xi32>
    %334 = vector.multi_reduction <minsi>, %333, %cst_92 [0] : vector<8x64xi32> to vector<64xi32>
    %335 = vector.shape_cast %334 : vector<64xi32> to vector<1x64xi32>
    %336 = vector.broadcast %335 : vector<1x64xi32> to vector<8x64xi32>
    %337 = arith.cmpi eq, %94, %336 : vector<8x64xi32>
    %338 = arith.extui %337 : vector<8x64xi1> to vector<8x64xi32>
    %339 = arith.sitofp %338 : vector<8x64xi32> to vector<8x64xf32>
    %cst_93 = arith.constant 1.000000e+00 : f32
    %340 = vector.broadcast %cst_93 : f32 to vector<1x64xf32>
    %341 = arith.cmpf ogt, %327, %340 : vector<1x64xf32>
    %342 = vector.shape_cast %341 : vector<1x64xi1> to vector<1x64xi1>
    %343 = vector.broadcast %342 : vector<1x64xi1> to vector<8x64xi1>
    %344 = arith.select %343, %339, %325 : vector<8x64xi1>, vector<8x64xf32>
    %cst_94 = arith.constant dense<0.000000e+00> : vector<64xf32>
    %345 = vector.multi_reduction <add>, %344, %cst_94 [0] : vector<8x64xf32> to vector<64xf32>
    %346 = vector.shape_cast %345 : vector<64xf32> to vector<1x64xf32>
    %cst_95 = arith.constant dense<0xFF800000> : vector<64xf32>
    %347 = vector.multi_reduction <maximumf>, %344, %cst_95 [0] : vector<8x64xf32> to vector<64xf32>
    %348 = vector.shape_cast %347 : vector<64xf32> to vector<1x64xf32>
    %349 = vector.broadcast %348 : vector<1x64xf32> to vector<8x64xf32>
    %350 = arith.cmpf oeq, %344, %349 : vector<8x64xf32>
    %c8_i32_96 = arith.constant 8 : i32
    %351 = vector.broadcast %c8_i32_96 : i32 to vector<8x64xi32>
    %352 = arith.select %350, %94, %351 : vector<8x64xi1>, vector<8x64xi32>
    %cst_97 = arith.constant dense<2147483647> : vector<64xi32>
    %353 = vector.multi_reduction <minsi>, %352, %cst_97 [0] : vector<8x64xi32> to vector<64xi32>
    %354 = vector.shape_cast %353 : vector<64xi32> to vector<1x64xi32>
    %355 = vector.broadcast %354 : vector<1x64xi32> to vector<8x64xi32>
    %356 = arith.cmpi eq, %94, %355 : vector<8x64xi32>
    %357 = arith.extui %356 : vector<8x64xi1> to vector<8x64xi32>
    %358 = arith.sitofp %357 : vector<8x64xi32> to vector<8x64xf32>
    %cst_98 = arith.constant dense<0.000000e+00> : vector<6x64xf32>
    %359 = tpu.matmul %8, %358, %cst_98 {dimension_numbers = #tpu.dot_dimension_numbers<[1], [0], [0], [1], [0, 0, 1, 1], [], []>, precision = #tpu.contract_precision<fp32>} : vector<6x8xf32>, vector<8x64xf32>, vector<6x64xf32> -> vector<6x64xf32>
    %360 = vector.extract_strided_slice %359 {offsets = [0, 0], sizes = [4, 64], strides = [1, 1]} : vector<6x64xf32> to vector<4x64xf32>
    %361 = vector.extract_strided_slice %359 {offsets = [4, 0], sizes = [1, 64], strides = [1, 1]} : vector<6x64xf32> to vector<1x64xf32>
    %cst_99 = arith.constant 5.000000e-01 : f32
    %362 = vector.broadcast %cst_99 : f32 to vector<1x64xf32>
    %363 = arith.addf %361, %362 : vector<1x64xf32>
    %364 = arith.fptosi %363 : vector<1x64xf32> to vector<1x64xi32>
    %cst_100 = arith.constant 0.000000e+00 : f32
    %365 = vector.broadcast %cst_100 : f32 to vector<1x64xf32>
    %366 = arith.cmpf ogt, %346, %365 : vector<1x64xf32>
    %c16_i32 = arith.constant 16 : i32
    %367 = vector.broadcast %c16_i32 : i32 to vector<1x64xi32>
    %368 = arith.select %366, %364, %367 : vector<1x64xi1>, vector<1x64xi32>
    %369 = vector.broadcast %9 : vector<16x1xi32> to vector<16x64xi32>
    %370 = vector.broadcast %368 : vector<1x64xi32> to vector<16x64xi32>
    %371 = arith.cmpi eq, %369, %370 : vector<16x64xi32>
    %372 = arith.extui %371 : vector<16x64xi1> to vector<16x64xi32>
    %373 = arith.sitofp %372 : vector<16x64xi32> to vector<16x64xf32>
    %374 = arith.mulf %70, %344 : vector<8x64xf32>
    %cst_101 = arith.constant dense<0xFF800000> : vector<8xf32>
    %375 = vector.multi_reduction <maximumf>, %374, %cst_101 [1] : vector<8x64xf32> to vector<8xf32>
    %376 = vector.shape_cast %375 : vector<8xf32> to vector<8x1xf32>
    %377 = arith.mulf %60, %344 : vector<8x64xf32>
    %cst_102 = arith.constant dense<0xFF800000> : vector<8xf32>
    %378 = vector.multi_reduction <maximumf>, %377, %cst_102 [1] : vector<8x64xf32> to vector<8xf32>
    %379 = vector.shape_cast %378 : vector<8xf32> to vector<8x1xf32>
    %cst_103 = arith.constant 9.99999971E-10 : f32
    %380 = vector.broadcast %cst_103 : f32 to vector<8x1xf32>
    %381 = arith.addf %376, %380 : vector<8x1xf32>
    %382 = arith.divf %379, %381 : vector<8x1xf32>
    %383 = vector.broadcast %382 : vector<8x1xf32> to vector<8x64xf32>
    %384 = arith.mulf %374, %383 : vector<8x64xf32>
    %cst_104 = arith.constant dense<0xFF800000> : vector<64xf32>
    %385 = vector.multi_reduction <maximumf>, %384, %cst_104 [0] : vector<8x64xf32> to vector<64xf32>
    %386 = vector.shape_cast %385 : vector<64xf32> to vector<1x64xf32>
    %c0_105 = arith.constant 0 : index
    %c0_106 = arith.constant 0 : index
    %c0_107 = arith.constant 0 : index
    %387 = vector.load %arg7[%c0_105, %c0_106, %c0_107] : memref<1x1x64xi32, #tpu.memory_space<vmem>>, vector<1x1x64xi32>
    %388 = vector.shape_cast %387 : vector<1x1x64xi32> to vector<1x64xi32>
    %389 = vector.shape_cast %368 : vector<1x64xi32> to vector<1x1x64xi32>
    tpu.vector_store %arg7[%c0_105, %c0_106, %c0_107], %389 {strides = array<i32>} : memref<1x1x64xi32, #tpu.memory_space<vmem>>, vector<1x1x64xi32>,
    %c0_108 = arith.constant 0 : index
    %c0_109 = arith.constant 0 : index
    %c0_110 = arith.constant 0 : index
    %390 = vector.load %arg8[%c0_108, %c0_109, %c0_110] : memref<1x4x64xf32, #tpu.memory_space<vmem>>, vector<1x4x64xf32>
    %391 = vector.shape_cast %390 : vector<1x4x64xf32> to vector<4x64xf32>
    %392 = vector.shape_cast %360 : vector<4x64xf32> to vector<1x4x64xf32>
    tpu.vector_store %arg8[%c0_108, %c0_109, %c0_110], %392 {strides = array<i32>} : memref<1x4x64xf32, #tpu.memory_space<vmem>>, vector<1x4x64xf32>,
    %393 = vector.broadcast %386 : vector<1x64xf32> to vector<16x64xf32>
    %394 = arith.mulf %373, %393 : vector<16x64xf32>
    %c0_111 = arith.constant 0 : index
    %c0_112 = arith.constant 0 : index
    %c0_113 = arith.constant 0 : index
    %395 = vector.load %arg9[%c0_111, %c0_112, %c0_113] : memref<1x16x64xf32, #tpu.memory_space<vmem>>, vector<1x16x64xf32>
    %396 = vector.shape_cast %395 : vector<1x16x64xf32> to vector<16x64xf32>
    %397 = vector.shape_cast %394 : vector<16x64xf32> to vector<1x16x64xf32>
    tpu.vector_store %arg9[%c0_111, %c0_112, %c0_113], %397 {strides = array<i32>} : memref<1x16x64xf32, #tpu.memory_space<vmem>>, vector<1x16x64xf32>,
    %c0_114 = arith.constant 0 : index
    %c0_115 = arith.constant 0 : index
    %c0_116 = arith.constant 0 : index
    %398 = vector.load %arg10[%c0_114, %c0_115, %c0_116] : memref<1x8x64xf32, #tpu.memory_space<vmem>>, vector<1x8x64xf32>
    %399 = vector.shape_cast %398 : vector<1x8x64xf32> to vector<8x64xf32>
    %400 = vector.shape_cast %344 : vector<8x64xf32> to vector<1x8x64xf32>
    tpu.vector_store %arg10[%c0_114, %c0_115, %c0_116], %400 {strides = array<i32>} : memref<1x8x64xf32, #tpu.memory_space<vmem>>, vector<1x8x64xf32>,
    return
  }
  func.func @transform_0(%arg0: i32) -> (i32, i32, i32) {
    %c0_i32 = arith.constant 0 : i32
    %c0_i32_0 = arith.constant 0 : i32
    %c0_i32_1 = arith.constant 0 : i32
    return %arg0, %c0_i32, %c0_i32_0 : i32, i32, i32
  }
  func.func @transform_1(%arg0: i32) -> (i32, i32, i32) {
    %c0_i32 = arith.constant 0 : i32
    %c0_i32_0 = arith.constant 0 : i32
    %c0_i32_1 = arith.constant 0 : i32
    return %arg0, %c0_i32, %c0_i32_0 : i32, i32, i32
  }
  func.func @transform_2(%arg0: i32) -> (i32, i32) {
    %c0_i32 = arith.constant 0 : i32
    %c0_i32_0 = arith.constant 0 : i32
    %c0_i32_1 = arith.constant 0 : i32
    return %c0_i32, %c0_i32_0 : i32, i32
  }
  func.func @transform_3(%arg0: i32) -> (i32, i32, i32) {
    %c0_i32 = arith.constant 0 : i32
    %c0_i32_0 = arith.constant 0 : i32
    %c0_i32_1 = arith.constant 0 : i32
    return %arg0, %c0_i32, %c0_i32_0 : i32, i32, i32
  }
  func.func @transform_4(%arg0: i32) -> (i32, i32, i32) {
    %c0_i32 = arith.constant 0 : i32
    %c0_i32_0 = arith.constant 0 : i32
    %c0_i32_1 = arith.constant 0 : i32
    return %arg0, %c0_i32, %c0_i32_0 : i32, i32, i32
  }
  func.func @transform_5(%arg0: i32) -> (i32, i32) {
    %c0_i32 = arith.constant 0 : i32
    %c0_i32_0 = arith.constant 0 : i32
    %c0_i32_1 = arith.constant 0 : i32
    return %c0_i32, %c0_i32_0 : i32, i32
  }
  func.func @transform_6(%arg0: i32) -> (i32, i32, i32) {
    %c0_i32 = arith.constant 0 : i32
    %c0_i32_0 = arith.constant 0 : i32
    %c0_i32_1 = arith.constant 0 : i32
    return %arg0, %c0_i32, %c0_i32_0 : i32, i32, i32
  }
  func.func @transform_7(%arg0: i32) -> (i32, i32, i32) {
    %c0_i32 = arith.constant 0 : i32
    %c0_i32_0 = arith.constant 0 : i32
    %c0_i32_1 = arith.constant 0 : i32
    return %arg0, %c0_i32, %c0_i32_0 : i32, i32, i32
  }
  func.func @transform_8(%arg0: i32) -> (i32, i32, i32) {
    %c0_i32 = arith.constant 0 : i32
    %c0_i32_0 = arith.constant 0 : i32
    %c0_i32_1 = arith.constant 0 : i32
    return %arg0, %c0_i32, %c0_i32_0 : i32, i32, i32
  }
  func.func @transform_9(%arg0: i32) -> (i32, i32, i32) {
    %c0_i32 = arith.constant 0 : i32
    %c0_i32_0 = arith.constant 0 : i32
    %c0_i32_1 = arith.constant 0 : i32
    return %arg0, %c0_i32, %c0_i32_0 : i32, i32, i32
  }
}

</mosaic_0001>

<llo_original>
// kernel: tpu_custom_call.1
$region0: #{tpu_custom_call.1}
  #allocation0 [shape = 'u32[]', space=smem, size = 0x4, offset = 0x4, fixed_abs, tag = 'smem constant byte address 0x4 - core index']
  #allocation1 [shape = 'u32[72,128]{1,0:T(1,128)}', space=vmem, size = 0x9000, scoped, tag = 'internal scratch']
  %s0 = inlined_call_operand.vmem [shape: f32[2,16,64], index: 0, kind: input, shape index: {}]
  %s1 = inlined_call_operand.vmem [shape: f32[2,4,64], index: 1, kind: input, shape index: {}]
  %s2 = inlined_call_operand.vmem [shape: f32[2,64], index: 2, kind: input, shape index: {}]
  %s3 = inlined_call_operand.vmem [shape: f32[2,8,6], index: 3, kind: input, shape index: {}]
  %s4 = inlined_call_operand.vmem [shape: f32[2,6,8], index: 4, kind: input, shape index: {}]
  %s5 = inlined_call_operand.vmem [shape: s32[16,1], index: 5, kind: input, shape index: {}]
  %s6 = inlined_call_operand.hbm [shape: s32[2,1,64], index: 6, kind: output, shape index: {0}]
  %s7 = inlined_call_operand.hbm [shape: f32[2,4,64], index: 7, kind: output, shape index: {1}]
  %s8 = inlined_call_operand.hbm [shape: f32[2,16,64], index: 8, kind: output, shape index: {2}]
  %s9 = inlined_call_operand.hbm [shape: f32[2,8,64], index: 9, kind: output, shape index: {3}]
  %10 = xla_tuple %s6, %s7, %s8, %s9
  %s11 = sld [smem:[#allocation0]]
  $region81: #{tpu_custom_call.1} parent=0
    _
  %s13 = ssub.s32 1, %s11
  %s14 = scalar_select 0, %s13, %s11
  $region1: #{tpu_custom_call.1} parent=0
    #allocation2 [shape = 'u8[1024]{0}', space=vmem, size = 0x400, scoped, tag = 'output window, operand 0']
    #allocation3 [shape = 's32[2]{0}', space=sflag, size = 0x8, scoped, tag = 'scoped memory for tpu_custom_call.1']
    #allocation4 [shape = 'u8[4096]{0}', space=vmem, size = 0x1000, scoped, tag = 'output window, operand 1']
    #allocation5 [shape = 's32[2]{0}', space=sflag, size = 0x8, scoped, tag = 'scoped memory for tpu_custom_call.1']
    #allocation6 [shape = 'u8[16384]{0}', space=vmem, size = 0x4000, scoped, tag = 'output window, operand 2']
    #allocation7 [shape = 'u8[8192]{0}', space=vmem, size = 0x2000, scoped, tag = 'output window, operand 3']
    #allocation8 [shape = 's32[2]{0}', space=sflag, size = 0x8, scoped, tag = 'scoped memory for tpu_custom_call.1']
    %15 = vsyncpa [#allocation3], 0
    %s16 = scalar_lea.sflag [#allocation3], 1
    %17 = vsyncpa %s16, 0
    %18 = vsyncpa [#allocation5], 0
    %s19 = scalar_lea.sflag [#allocation5], 1
    %20 = vsyncpa %s19, 0
    %21 = vsyncpa [#allocation8], 0
    %s22 = scalar_lea.sflag [#allocation8], 1
    %23 = vsyncpa %s22, 0
    loop: start=0, step=1, limit=4
    $region2: #{tpu_custom_call.1} parent=1 // loop_pre_header
      _
    $region3: #{tpu_custom_call.1} parent=1 // loop_header
      %s25 = sphi 0, %s29
      %p26 = scmp.ge.s32.totalorder %s25, 4
      %s35 = sphi 0, %s37
      %s38 = sphi 0, %s35
      %s39 = sphi 0, %s38
      %s55 = sphi 0, %s39
      %s61 = sphi 0, %s63
      %s64 = sphi 0, %s61
      %s65 = sphi 0, %s64
      %s81 = sphi 0, %s65
      %s85 = sphi 0, %s85
      %s87 = sphi 0, %s85
      %s88 = sphi 0, %s87
      %s102 = sphi 0, %s88
      %s108 = sphi 0, %s110
      %s111 = sphi 0, %s108
      %s112 = sphi 0, %s111
      %s128 = sphi 0, %s112
      %s134 = sphi 0, %s136
      %s137 = sphi 0, %s134
      %s138 = sphi 0, %s137
      %s154 = sphi 0, %s138
      %s158 = sphi 0, %s158
      %s160 = sphi 0, %s158
      %s161 = sphi 0, %s160
      %s175 = sphi 0, %s161
      %s181 = sphi 0, %s183
      %s184 = sphi 0, %s181
      %s185 = sphi 0, %s184
      %s201 = sphi 0, %s185
      %s207 = sphi 0, %s209
      %s210 = sphi 0, %s207
      %s211 = sphi 0, %s210
      %s227 = sphi 0, %s211
      %s233 = sphi 0, %s235
      %s236 = sphi 0, %s233
      %s237 = sphi 0, %s236
      %s253 = sphi 0, %s237
      %s259 = sphi 0, %s261
      %s262 = sphi 0, %s259
      %s263 = sphi 0, %s262
      %s279 = sphi 0, %s263
    $region4: #{tpu_custom_call.1} parent=1 // loop_header_branch
      %28 = sbr.rel (%p26) target = $region8
    $region5: #{tpu_custom_call.1} parent=1 // loop_body
      %s30 = ssub.s32 %s25, 1
      %s31 = ssub.s32 %s25, 2
      %s32 = sadd.s32 %s25, 1
      %s33 = ssub.s32 %s25, %s32
      %p34 = scmp.eq.s32.totalorder %s33, 0
      %s36 = sadd.s32 %s35, 1
      %s37 = scalar_select %p34, %s35, %s36
      %p40 = pneg %p34
      %p41 = scmp.eq.s32.totalorder %s25, 1
      %p42 = por %p40, %p41
      %p43 = scmp.ne.s32.totalorder %s35, %s38
      %p44 = scmp.eq.s32.totalorder %s25, 0
      %p45 = por %p43, %p44
      %p46 = scmp.ne.s32.totalorder %s35, %s38
      %p47 = scmp.eq.s32.totalorder %s30, 1
      %p48 = por %p46, %p47
      %p49 = scmp.ne.s32.totalorder %s38, %s39
      %p50 = scmp.eq.s32.totalorder %s30, 0
      %p51 = por %p49, %p50
      %p52 = scmp.ne.s32.totalorder %s38, %s39
      %p53 = scmp.eq.s32.totalorder %s31, 1
      %p54 = por %p52, %p53
      %p56 = scmp.ne.s32.totalorder %s39, %s55
      %p57 = scmp.eq.s32.totalorder %s31, 0
      %p58 = por %p56, %p57
      %s59 = ssub.s32 %s25, %s32
      %p60 = scmp.eq.s32.totalorder %s59, 0
      %s62 = sadd.s32 %s61, 1
      %s63 = scalar_select %p60, %s61, %s62
      %p66 = pneg %p60
      %p67 = scmp.eq.s32.totalorder %s25, 1
      %p68 = por %p66, %p67
      %p69 = scmp.ne.s32.totalorder %s61, %s64
      %p70 = scmp.eq.s32.totalorder %s25, 0
      %p71 = por %p69, %p70
      %p72 = scmp.ne.s32.totalorder %s61, %s64
      %p73 = scmp.eq.s32.totalorder %s30, 1
      %p74 = por %p72, %p73
      %p75 = scmp.ne.s32.totalorder %s64, %s65
      %p76 = scmp.eq.s32.totalorder %s30, 0
      %p77 = por %p75, %p76
      %p78 = scmp.ne.s32.totalorder %s64, %s65
      %p79 = scmp.eq.s32.totalorder %s31, 1
      %p80 = por %p78, %p79
      %p82 = scmp.ne.s32.totalorder %s65, %s81
      %p83 = scmp.eq.s32.totalorder %s31, 0
      %p84 = por %p82, %p83
      %s86 = sadd.s32 %s85, 1
      %p89 = scmp.eq.s32.totalorder %s25, 1
      %p90 = scmp.ne.s32.totalorder %s85, %s87
      %p91 = scmp.eq.s32.totalorder %s25, 0
      %p92 = por %p90, %p91
      %p93 = scmp.ne.s32.totalorder %s85, %s87
      %p94 = scmp.eq.s32.totalorder %s30, 1
      %p95 = por %p93, %p94
      %p96 = scmp.ne.s32.totalorder %s87, %s88
      %p97 = scmp.eq.s32.totalorder %s30, 0
      %p98 = por %p96, %p97
      %p99 = scmp.ne.s32.totalorder %s87, %s88
      %p100 = scmp.eq.s32.totalorder %s31, 1
      %p101 = por %p99, %p100
      %p103 = scmp.ne.s32.totalorder %s88, %s102
      %p104 = scmp.eq.s32.totalorder %s31, 0
      %p105 = por %p103, %p104
      %s106 = ssub.s32 %s25, %s32
      %p107 = scmp.eq.s32.totalorder %s106, 0
      %s109 = sadd.s32 %s108, 1
      %s110 = scalar_select %p107, %s108, %s109
      %p113 = pneg %p107
      %p114 = scmp.eq.s32.totalorder %s25, 1
      %p115 = por %p113, %p114
      %p116 = scmp.ne.s32.totalorder %s108, %s111
      %p117 = scmp.eq.s32.totalorder %s25, 0
      %p118 = por %p116, %p117
      %p119 = scmp.ne.s32.totalorder %s108, %s111
      %p120 = scmp.eq.s32.totalorder %s30, 1
      %p121 = por %p119, %p120
      %p122 = scmp.ne.s32.totalorder %s111, %s112
      %p123 = scmp.eq.s32.totalorder %s30, 0
      %p124 = por %p122, %p123
      %p125 = scmp.ne.s32.totalorder %s111, %s112
      %p126 = scmp.eq.s32.totalorder %s31, 1
      %p127 = por %p125, %p126
      %p129 = scmp.ne.s32.totalorder %s112, %s128
      %p130 = scmp.eq.s32.totalorder %s31, 0
      %p131 = por %p129, %p130
      %s132 = ssub.s32 %s25, %s32
      %p133 = scmp.eq.s32.totalorder %s132, 0
      %s135 = sadd.s32 %s134, 1
      %s136 = scalar_select %p133, %s134, %s135
      %p139 = pneg %p133
      %p140 = scmp.eq.s32.totalorder %s25, 1
      %p141 = por %p139, %p140
      %p142 = scmp.ne.s32.totalorder %s134, %s137
      %p143 = scmp.eq.s32.totalorder %s25, 0
      %p144 = por %p142, %p143
      %p145 = scmp.ne.s32.totalorder %s134, %s137
      %p146 = scmp.eq.s32.totalorder %s30, 1
      %p147 = por %p145, %p146
      %p148 = scmp.ne.s32.totalorder %s137, %s138
      %p149 = scmp.eq.s32.totalorder %s30, 0
      %p150 = por %p148, %p149
      %p151 = scmp.ne.s32.totalorder %s137, %s138
      %p152 = scmp.eq.s32.totalorder %s31, 1
      %p153 = por %p151, %p152
      %p155 = scmp.ne.s32.totalorder %s138, %s154
      %p156 = scmp.eq.s32.totalorder %s31, 0
      %p157 = por %p155, %p156
      %s159 = sadd.s32 %s158, 1
      %p162 = scmp.eq.s32.totalorder %s25, 1
      %p163 = scmp.ne.s32.totalorder %s158, %s160
      %p164 = scmp.eq.s32.totalorder %s25, 0
      %p165 = por %p163, %p164
      %p166 = scmp.ne.s32.totalorder %s158, %s160
      %p167 = scmp.eq.s32.totalorder %s30, 1
      %p168 = por %p166, %p167
      %p169 = scmp.ne.s32.totalorder %s160, %s161
      %p170 = scmp.eq.s32.totalorder %s30, 0
      %p171 = por %p169, %p170
      %p172 = scmp.ne.s32.totalorder %s160, %s161
      %p173 = scmp.eq.s32.totalorder %s31, 1
      %p174 = por %p172, %p173
      %p176 = scmp.ne.s32.totalorder %s161, %s175
      %p177 = scmp.eq.s32.totalorder %s31, 0
      %p178 = por %p176, %p177
      %s179 = ssub.s32 %s25, %s32
      %p180 = scmp.eq.s32.totalorder %s179, 0
      %s182 = sadd.s32 %s181, 1
      %s183 = scalar_select %p180, %s181, %s182
      %p186 = pneg %p180
      %p187 = scmp.eq.s32.totalorder %s25, 1
      %p188 = por %p186, %p187
      %p189 = scmp.ne.s32.totalorder %s181, %s184
      %p190 = scmp.eq.s32.totalorder %s25, 0
      %p191 = por %p189, %p190
      %p192 = scmp.ne.s32.totalorder %s181, %s184
      %p193 = scmp.eq.s32.totalorder %s30, 1
      %p194 = por %p192, %p193
      %p195 = scmp.ne.s32.totalorder %s184, %s185
      %p196 = scmp.eq.s32.totalorder %s30, 0
      %p197 = por %p195, %p196
      %p198 = scmp.ne.s32.totalorder %s184, %s185
      %p199 = scmp.eq.s32.totalorder %s31, 1
      %p200 = por %p198, %p199
      %p202 = scmp.ne.s32.totalorder %s185, %s201
      %p203 = scmp.eq.s32.totalorder %s31, 0
      %p204 = por %p202, %p203
      %s205 = ssub.s32 %s25, %s32
      %p206 = scmp.eq.s32.totalorder %s205, 0
      %s208 = sadd.s32 %s207, 1
      %s209 = scalar_select %p206, %s207, %s208
      %p212 = pneg %p206
      %p213 = scmp.eq.s32.totalorder %s25, 1
      %p214 = por %p212, %p213
      %p215 = scmp.ne.s32.totalorder %s207, %s210
      %p216 = scmp.eq.s32.totalorder %s25, 0
      %p217 = por %p215, %p216
      %p218 = scmp.ne.s32.totalorder %s207, %s210
      %p219 = scmp.eq.s32.totalorder %s30, 1
      %p220 = por %p218, %p219
      %p221 = scmp.ne.s32.totalorder %s210, %s211
      %p222 = scmp.eq.s32.totalorder %s30, 0
      %p223 = por %p221, %p222
      %p224 = scmp.ne.s32.totalorder %s210, %s211
      %p225 = scmp.eq.s32.totalorder %s31, 1
      %p226 = por %p224, %p225
      %p228 = scmp.ne.s32.totalorder %s211, %s227
      %p229 = scmp.eq.s32.totalorder %s31, 0
      %p230 = por %p228, %p229
      %s231 = ssub.s32 %s25, %s32
      %p232 = scmp.eq.s32.totalorder %s231, 0
      %s234 = sadd.s32 %s233, 1
      %s235 = scalar_select %p232, %s233, %s234
      %p238 = pneg %p232
      %p239 = scmp.eq.s32.totalorder %s25, 1
      %p240 = por %p238, %p239
      %p241 = scmp.ne.s32.totalorder %s233, %s236
      %p242 = scmp.eq.s32.totalorder %s25, 0
      %p243 = por %p241, %p242
      %p244 = scmp.ne.s32.totalorder %s233, %s236
      %p245 = scmp.eq.s32.totalorder %s30, 1
      %p246 = por %p244, %p245
      %p247 = scmp.ne.s32.totalorder %s236, %s237
      %p248 = scmp.eq.s32.totalorder %s30, 0
      %p249 = por %p247, %p248
      %p250 = scmp.ne.s32.totalorder %s236, %s237
      %p251 = scmp.eq.s32.totalorder %s31, 1
      %p252 = por %p250, %p251
      %p254 = scmp.ne.s32.totalorder %s237, %s253
      %p255 = scmp.eq.s32.totalorder %s31, 0
      %p256 = por %p254, %p255
      %s257 = ssub.s32 %s25, %s32
      %p258 = scmp.eq.s32.totalorder %s257, 0
      %s260 = sadd.s32 %s259, 1
      %s261 = scalar_select %p258, %s259, %s260
      %p264 = pneg %p258
      %p265 = scmp.eq.s32.totalorder %s25, 1
      %p266 = por %p264, %p265
      %p267 = scmp.ne.s32.totalorder %s259, %s262
      %p268 = scmp.eq.s32.totalorder %s25, 0
      %p269 = por %p267, %p268
      %p270 = scmp.ne.s32.totalorder %s259, %s262
      %p271 = scmp.eq.s32.totalorder %s30, 1
      %p272 = por %p270, %p271
      %p273 = scmp.ne.s32.totalorder %s262, %s263
      %p274 = scmp.eq.s32.totalorder %s30, 0
      %p275 = por %p273, %p274
      %p276 = scmp.ne.s32.totalorder %s262, %s263
      %p277 = scmp.eq.s32.totalorder %s31, 1
      %p278 = por %p276, %p277
      %p280 = scmp.ne.s32.totalorder %s263, %s279
      %p281 = scmp.eq.s32.totalorder %s31, 0
      %p282 = por %p280, %p281
      %p283 = scmp.le.s32.totalorder 1, %s25
      %p284 = scmp.lt.s32.totalorder %s25, 3
      %p285 = pnand %p283, %p284
      %p286 = pneg %p285
      // Predicated region
      $region9: #{tpu_custom_call.1} parent=5 // pred_check
        _
      $region10: #{tpu_custom_call.1} parent=5 // pred_check_branch
        %288 = sbr.rel (%p285) target = $region12
      $region11: #{tpu_custom_call.1} parent=5 // pred_region
        %s289 = ssub.s32 %s25, 1
        // Predicated region
        $region13: #{tpu_custom_call.1} parent=11 // pred_check
          %p290 = pneg %p98
        $region14: #{tpu_custom_call.1} parent=11 // pred_check_branch
          %292 = sbr.rel (%p290) target = $region16
        $region15: #{tpu_custom_call.1} parent=11 // pred_region
          _
        $region16: #{tpu_custom_call.1} parent=11 // pred_fallthru
          _
        // Predicated region
        $region17: #{tpu_custom_call.1} parent=11 // pred_check
          %p293 = pneg %p171
        $region18: #{tpu_custom_call.1} parent=11 // pred_check_branch
          %295 = sbr.rel (%p293) target = $region20
        $region19: #{tpu_custom_call.1} parent=11 // pred_region
          _
        $region20: #{tpu_custom_call.1} parent=11 // pred_fallthru
          _
      $region12: #{tpu_custom_call.1} parent=5 // pred_fallthru
        _
      %p296 = scmp.lt.s32.totalorder %s25, 2
      // Predicated region
      $region21: #{tpu_custom_call.1} parent=5 // pred_check
        %p297 = pneg %p296
      $region22: #{tpu_custom_call.1} parent=5 // pred_check_branch
        %299 = sbr.rel (%p297) target = $region24
      $region23: #{tpu_custom_call.1} parent=5 // pred_region
        // Predicated region
        $region25: #{tpu_custom_call.1} parent=23 // pred_check
          %p300 = pneg %p45
        $region26: #{tpu_custom_call.1} parent=23 // pred_check_branch
          %302 = sbr.rel (%p300) target = $region28
        $region27: #{tpu_custom_call.1} parent=23 // pred_region
          %p303 = scmp.lt.s32.totalorder %s25, 1
          %s304 = scalar_select %p303, %s25, 1
          %s305 = smul.addr %s304, 2
          %s306 = smul.addr %s305, 8
          %s307 = scalar_lea.vmem %s0, %s306
        $region28: #{tpu_custom_call.1} parent=23 // pred_fallthru
          _
        // Predicated region
        $region29: #{tpu_custom_call.1} parent=23 // pred_check
          %p308 = pneg %p71
        $region30: #{tpu_custom_call.1} parent=23 // pred_check_branch
          %310 = sbr.rel (%p308) target = $region32
        $region31: #{tpu_custom_call.1} parent=23 // pred_region
          %p311 = scmp.lt.s32.totalorder %s25, 1
          %s312 = scalar_select %p311, %s25, 1
          %s313 = smul.addr %s312, 4
          %s314 = scalar_lea.vmem %s1, %s313
        $region32: #{tpu_custom_call.1} parent=23 // pred_fallthru
          _
        // Predicated region
        $region33: #{tpu_custom_call.1} parent=23 // pred_check
          %p315 = pneg %p118
        $region34: #{tpu_custom_call.1} parent=23 // pred_check_branch
          %317 = sbr.rel (%p315) target = $region36
        $region35: #{tpu_custom_call.1} parent=23 // pred_region
          %p318 = scmp.lt.s32.totalorder %s25, 1
          %s319 = scalar_select %p318, %s25, 1
          %s320 = smul.addr %s319, 8
          %s321 = scalar_lea.vmem %s3, %s320
        $region36: #{tpu_custom_call.1} parent=23 // pred_fallthru
          _
        // Predicated region
        $region37: #{tpu_custom_call.1} parent=23 // pred_check
          %p322 = pneg %p144
        $region38: #{tpu_custom_call.1} parent=23 // pred_check_branch
          %324 = sbr.rel (%p322) target = $region40
        $region39: #{tpu_custom_call.1} parent=23 // pred_region
          %p325 = scmp.lt.s32.totalorder %s25, 1
          %s326 = scalar_select %p325, %s25, 1
          %s327 = smul.addr %s326, 8
          %s328 = scalar_lea.vmem %s4, %s327
        $region40: #{tpu_custom_call.1} parent=23 // pred_fallthru
          _
      $region24: #{tpu_custom_call.1} parent=5 // pred_fallthru
        _
      %p329 = scmp.le.s32.totalorder 1, %s25
      %p330 = scmp.lt.s32.totalorder %s25, 3
      %p331 = pnand %p329, %p330
      %p332 = pneg %p331
      // Predicated region
      $region41: #{tpu_custom_call.1} parent=5 // pred_check
        _
      $region42: #{tpu_custom_call.1} parent=5 // pred_check_branch
        %334 = sbr.rel (%p331) target = $region44
      $region43: #{tpu_custom_call.1} parent=5 // pred_region
        %s335 = ssub.s32 %s25, 1
        %p336 = scmp.lt.s32.totalorder %s30, 1
        %s337 = scalar_select %p336, %s30, 1
        %s338 = smul.addr %s337, 2
        %s339 = smul.addr %s338, 8
        %s340 = scalar_lea.vmem %s0, %s339
        %p341 = pneg %p51
        %p342 = pneg %p48
        %p343 = scmp.lt.s32.totalorder %s30, 1
        %s344 = scalar_select %p343, %s30, 1
        %s345 = smul.addr %s344, 4
        %s346 = scalar_lea.vmem %s1, %s345
        %p347 = pneg %p77
        %p348 = pneg %p74
        %p349 = pneg %p98
        %p350 = pneg %p95
        %p351 = scmp.lt.s32.totalorder %s30, 1
        %s352 = scalar_select %p351, %s30, 1
        %s353 = smul.addr %s352, 8
        %s354 = scalar_lea.vmem %s3, %s353
        %p355 = pneg %p124
        %p356 = pneg %p121
        %p357 = scmp.lt.s32.totalorder %s30, 1
        %s358 = scalar_select %p357, %s30, 1
        %s359 = smul.addr %s358, 8
        %s360 = scalar_lea.vmem %s4, %s359
        %p361 = pneg %p150
        %p362 = pneg %p147
        %p363 = pneg %p171
        %p364 = pneg %p168
        %p365 = pneg %p197
        %p366 = pneg %p194
        %s367 = sand.u32 %s184, 1
        %s368 = scalar_lea.sflag [#allocation3], %s367
        %s369 = sand.u32 %s184, 1
        %s370 = scalar_lea.vmem [#allocation2], %s369
        %p371 = pneg %p223
        %p372 = pneg %p220
        %s373 = sand.u32 %s30, 1
        %s374 = scalar_lea.sflag [#allocation5], %s373
        %s375 = sand.u32 %s210, 1
        %s376 = smul.addr %s375, 4
        %s377 = scalar_lea.vmem [#allocation4], %s376
        %p378 = pneg %p249
        %p379 = pneg %p246
        %s380 = sand.u32 %s30, 1
        %s381 = scalar_lea.sflag [#allocation5], %s380
        %s382 = sand.u32 %s236, 1
        %s383 = smul.addr %s382, 16
        %s384 = scalar_lea.vmem [#allocation6], %s383
        %p385 = pneg %p275
        %p386 = pneg %p272
        %s387 = sand.u32 %s262, 1
        %s388 = scalar_lea.sflag [#allocation8], %s387
        %s389 = sand.u32 %s262, 1
        %s390 = smul.addr %s389, 8
        %s391 = scalar_lea.vmem [#allocation7], %s390
        %p392 = scmp.lt.s32.totalorder %s30, 1
        %s393 = scalar_select %p392, %s30, 1
        %s394 = smul.addr %s393, 2
        %s395 = smul.addr %s394, 8
        %s396 = scalar_lea.vmem %s0, %s395
        %p397 = scmp.lt.s32.totalorder %s30, 1
        %s398 = scalar_select %p397, %s30, 1
        %s399 = smul.addr %s398, 4
        %s400 = scalar_lea.vmem %s1, %s399
        %p401 = scmp.lt.s32.totalorder %s30, 1
        %s402 = scalar_select %p401, %s30, 1
        %s403 = smul.addr %s402, 8
        %s404 = scalar_lea.vmem %s3, %s403
        %p405 = scmp.lt.s32.totalorder %s30, 1
        %s406 = scalar_select %p405, %s30, 1
        %s407 = smul.addr %s406, 8
        %s408 = scalar_lea.vmem %s4, %s407
        %v409 = vld [vmem:[%s396] sm:$0xff]
        %v410 = vld [vmem:[%s396 + $0x8] sm:$0xff]
        %v411 = vld [vmem:[%s400] sm:$0xf]
        %v412 = vld [vmem:[%s2] sm:$0x3]
        %v413 = vld [vmem:[%s404] sm:$0xff]
        %v414 = vld [vmem:[%s408] sm:$0x3f]
        %v415 = vld [vmem:[%s5] sm:$0xff]
        %v416 = vld [vmem:[%s5 + $0x8] sm:$0xff]
        %v417 = vcvt.f32.s32.to.zero.pseudo %v413
        %419 = vset.pattern.permute.xlu0 0
        %420 = vperm.xlu0 %419, %v413
        %v421 = vpop.permute.xlu0 %420
        %v423 = vperm.slane %v411, 0
        %v424 = vmax.f32 %v421, %v423
        %425 = vset.pattern.permute.xlu0 1
        %426 = vperm.xlu0 %425, %v413
        %v427 = vpop.permute.xlu0 %426
        %v429 = vperm.slane %v411, 1
        %v430 = vmax.f32 %v427, %v429
        %431 = vset.pattern.permute.xlu0 2
        %432 = vperm.xlu0 %431, %v413
        %v433 = vpop.permute.xlu0 %432
        %v435 = vperm.slane %v411, 2
        %v436 = vmin.f32 %v433, %v435
        %437 = vset.pattern.permute.xlu0 3
        %438 = vperm.xlu0 %437, %v413
        %v439 = vpop.permute.xlu0 %438
        %v441 = vperm.slane %v411, 3
        %v442 = vmin.f32 %v439, %v441
        %v443 = vsub.f32 %v436, %v424
        %v444 = vmax.f32 %v443, 0.0
        %v445 = vsub.f32 %v442, %v430
        %v446 = vmax.f32 %v445, 0.0
        %v447 = vmul.f32 %v444, %v446
        %448 = vrot.lane.b32.xlu0 %v413, 2
        %v449 = vpop.permute.xlu0 %448
        %v451 = vsub.f32 %v413, %v449
        %v452 = vmax.f32 %v451, 0.0
        %454 = vrot.lane.b32.xlu0 %v452, 127
        %v455 = vpop.permute.xlu0 %454
        %v457 = vmul.f32 %v452, %v455
        %v459 = vrot.slane %v411, 6
        %v461 = vsub.f32 %v411, %v459
        %v462 = vmax.f32 %v461, 0.0
        %v464 = vrot.slane %v462, 1
        %v466 = vmul.f32 %v462, %v464
        %468 = vset.pattern.permute.xlu0 2
        %469 = vperm.xlu0 %468, %v457
        %v470 = vpop.permute.xlu0 %469
        %v472 = vperm.slane %v466, 2
        %v473 = vadd.f32 %v470, %v472
        %v474 = vsub.f32 %v473, %v447
        %v475 = vadd.f32 %v474, 1e-09
        %v476 = vrcp.pop %v475
        %v477 = vmul.f32 %v475, %v476
        %v478 = vsub.f32 1.0, %v477
        %v479 = vmul.f32 %v476, %v478
        %v480 = vadd.f32 %v476, %v479
        %vm481 = vweird.f32 %v475
        %vm482 = vweird.f32 %v476
        %vm483 = vmor %vm481, %vm482
        %v484 = vsel %vm483, %v476, %v480
        %v485 = vand.u32 2147483647, %v475
        %vm486 = vcmp.eq.f32.partialorder %v485, 8.507059e+37
        %v487 = vand.u32 %v475, 2147483648
        %v488 = vor.u32 1.1754944e-38, %v487
        %v489 = vsel %vm486, %v488, %v484
        %v490 = vmul.f32 %v447, %v489
        %v491 = vlaneseq
        %v492 = vand.u32 %v491, 127
        %493 = vset.pattern.permute.xlu0 4
        %494 = vperm.xlu0 %493, %v417
        %v495 = vpop.permute.xlu0 %494
        %vm496 = vcmp.eq.s32.totalorder %v495, %v492
        %v497 = vsel %vm496, 1, 0
        %v498 = vcvt.s32.f32 %v497
        %vm499 = vcmask 130048
        %v501 = vsel %vm499, %v498, 0
        %503 = vmatpush.msra.mxu0 0.0
        %504 = vmatpush.msra.mxu0 0.0
        %505 = vmatpush.msra.mxu0 0.0
        %506 = vmatpush.msra.mxu0 0.0
        %507 = vmatpush.msra.mxu0 0.0
        %508 = vmatpush.msra.mxu0 0.0
        %509 = vmatpush.msra.mxu0 0.0
        %510 = vmatpush.msra.mxu0 0.0
        %511 = vmatpush.msra.mxu0 0.0
        %512 = vmatpush.msra.mxu0 0.0
        %513 = vmatpush.msra.mxu0 0.0
        %514 = vmatpush.msra.mxu0 0.0
        %515 = vmatpush.msra.mxu0 0.0
        %516 = vmatpush.msra.mxu0 0.0
        %v517 = vand.u32 %v410, 4294901760
        %518 = vmatpush.msra.mxu0 %v517
        %v519 = vand.u32 %v409, 4294901760
        %520 = vmatpush.msra.mxu0 %v519
        %v521 = vand.u32 %v501, 4294901760
        %v522 = vsub.f32 %v501, %v521
        %v523 = vand.u32 %v522, 4294901760
        %v524 = vsub.f32 %v522, %v523
        %v525 = vand.u32 %v524, 4294901760
        %526 = vmatmul.f32.gmra.mxu0 %v525
        %v527 = vpop.f32.mrf.mxu0
        %v528 = vadd.f32 0.0, %v527
        %529 = vdwg.mxu0
        %530 = vmatpush.msra.mxu0 0.0
        %531 = vmatpush.msra.mxu0 0.0
        %532 = vmatpush.msra.mxu0 0.0
        %533 = vmatpush.msra.mxu0 0.0
        %534 = vmatpush.msra.mxu0 0.0
        %535 = vmatpush.msra.mxu0 0.0
        %536 = vmatpush.msra.mxu0 0.0
        %537 = vmatpush.msra.mxu0 0.0
        %538 = vmatpush.msra.mxu0 0.0
        %539 = vmatpush.msra.mxu0 0.0
        %540 = vmatpush.msra.mxu0 0.0
        %541 = vmatpush.msra.mxu0 0.0
        %542 = vmatpush.msra.mxu0 0.0
        %543 = vmatpush.msra.mxu0 0.0
        %v544 = vand.u32 %v410, 4294901760
        %v545 = vsub.f32 %v410, %v544
        %v546 = vand.u32 %v545, 4294901760
        %v547 = vsub.f32 %v545, %v546
        %v548 = vand.u32 %v547, 4294901760
        %549 = vmatpush.msra.mxu0 %v548
        %v550 = vand.u32 %v409, 4294901760
        %v551 = vsub.f32 %v409, %v550
        %v552 = vand.u32 %v551, 4294901760
        %v553 = vsub.f32 %v551, %v552
        %v554 = vand.u32 %v553, 4294901760
        %555 = vmatpush.msra.mxu0 %v554
        %v556 = vand.u32 %v501, 4294901760
        %557 = vmatmul.f32.gmra.mxu0 %v556
        %v558 = vpop.f32.mrf.mxu0
        %v559 = vadd.f32 %v528, %v558
        %560 = vdwg.mxu0
        %561 = vmatpush.msra.mxu0 0.0
        %562 = vmatpush.msra.mxu0 0.0
        %563 = vmatpush.msra.mxu0 0.0
        %564 = vmatpush.msra.mxu0 0.0
        %565 = vmatpush.msra.mxu0 0.0
        %566 = vmatpush.msra.mxu0 0.0
        %567 = vmatpush.msra.mxu0 0.0
        %568 = vmatpush.msra.mxu0 0.0
        %569 = vmatpush.msra.mxu0 0.0
        %570 = vmatpush.msra.mxu0 0.0
        %571 = vmatpush.msra.mxu0 0.0
        %572 = vmatpush.msra.mxu0 0.0
        %573 = vmatpush.msra.mxu0 0.0
        %574 = vmatpush.msra.mxu0 0.0
        %v575 = vand.u32 %v410, 4294901760
        %v576 = vsub.f32 %v410, %v575
        %577 = vmatpush.msra.mxu0 %v576
        %v578 = vand.u32 %v409, 4294901760
        %v579 = vsub.f32 %v409, %v578
        %580 = vmatpush.msra.mxu0 %v579
        %v581 = vand.u32 %v501, 4294901760
        %v582 = vsub.f32 %v501, %v581
        %583 = vmatmul.f32.gmra.mxu0 %v582
        %v584 = vpop.f32.mrf.mxu0
        %v585 = vadd.f32 %v559, %v584
        %586 = vdwg.mxu0
        %587 = vmatpush.msra.mxu0 0.0
        %588 = vmatpush.msra.mxu0 0.0
        %589 = vmatpush.msra.mxu0 0.0
        %590 = vmatpush.msra.mxu0 0.0
        %591 = vmatpush.msra.mxu0 0.0
        %592 = vmatpush.msra.mxu0 0.0
        %593 = vmatpush.msra.mxu0 0.0
        %594 = vmatpush.msra.mxu0 0.0
        %595 = vmatpush.msra.mxu0 0.0
        %596 = vmatpush.msra.mxu0 0.0
        %597 = vmatpush.msra.mxu0 0.0
        %598 = vmatpush.msra.mxu0 0.0
        %599 = vmatpush.msra.mxu0 0.0
        %600 = vmatpush.msra.mxu0 0.0
        %v601 = vand.u32 %v410, 4294901760
        %602 = vmatpush.msra.mxu0 %v601
        %v603 = vand.u32 %v409, 4294901760
        %604 = vmatpush.msra.mxu0 %v603
        %v605 = vand.u32 %v501, 4294901760
        %v606 = vsub.f32 %v501, %v605
        %v607 = vand.u32 %v606, 4294901760
        %608 = vmatmul.f32.gmra.mxu0 %v607
        %v609 = vpop.f32.mrf.mxu0
        %v610 = vadd.f32 %v585, %v609
        %611 = vdwg.mxu0
        %612 = vmatpush.msra.mxu0 0.0
        %613 = vmatpush.msra.mxu0 0.0
        %614 = vmatpush.msra.mxu0 0.0
        %615 = vmatpush.msra.mxu0 0.0
        %616 = vmatpush.msra.mxu0 0.0
        %617 = vmatpush.msra.mxu0 0.0
        %618 = vmatpush.msra.mxu0 0.0
        %619 = vmatpush.msra.mxu0 0.0
        %620 = vmatpush.msra.mxu0 0.0
        %621 = vmatpush.msra.mxu0 0.0
        %622 = vmatpush.msra.mxu0 0.0
        %623 = vmatpush.msra.mxu0 0.0
        %624 = vmatpush.msra.mxu0 0.0
        %625 = vmatpush.msra.mxu0 0.0
        %v626 = vand.u32 %v410, 4294901760
        %v627 = vsub.f32 %v410, %v626
        %v628 = vand.u32 %v627, 4294901760
        %629 = vmatpush.msra.mxu0 %v628
        %v630 = vand.u32 %v409, 4294901760
        %v631 = vsub.f32 %v409, %v630
        %v632 = vand.u32 %v631, 4294901760
        %633 = vmatpush.msra.mxu0 %v632
        %v634 = vand.u32 %v501, 4294901760
        %635 = vmatmul.f32.gmra.mxu0 %v634
        %v636 = vpop.f32.mrf.mxu0
        %v637 = vadd.f32 %v610, %v636
        %638 = vdwg.mxu0
        %639 = vmatpush.msra.mxu0 0.0
        %640 = vmatpush.msra.mxu0 0.0
        %641 = vmatpush.msra.mxu0 0.0
        %642 = vmatpush.msra.mxu0 0.0
        %643 = vmatpush.msra.mxu0 0.0
        %644 = vmatpush.msra.mxu0 0.0
        %645 = vmatpush.msra.mxu0 0.0
        %646 = vmatpush.msra.mxu0 0.0
        %647 = vmatpush.msra.mxu0 0.0
        %648 = vmatpush.msra.mxu0 0.0
        %649 = vmatpush.msra.mxu0 0.0
        %650 = vmatpush.msra.mxu0 0.0
        %651 = vmatpush.msra.mxu0 0.0
        %652 = vmatpush.msra.mxu0 0.0
        %v653 = vand.u32 %v410, 4294901760
        %654 = vmatpush.msra.mxu0 %v653
        %v655 = vand.u32 %v409, 4294901760
        %656 = vmatpush.msra.mxu0 %v655
        %v657 = vand.u32 %v501, 4294901760
        %658 = vmatmul.f32.gmra.mxu0 %v657
        %v659 = vpop.f32.mrf.mxu0
        %v660 = vadd.f32 %v637, %v659
        %661 = vdwg.mxu0
        %v662 = vmul.f32 %v490, %v490
        %v663 = vmul.f32 %v662, %v662
        %v664 = vmul.f32 %v662, %v663
        %v665 = vmul.f32 %v660, %v664
        %v666 = vperm.slane %v412, 0
        %v667 = vsub.f32 %v666, %v421
        %v668 = vperm.slane %v412, 1
        %v669 = vsub.f32 %v668, %v427
        %v670 = vmin.f32 %v667, %v669
        %v671 = vsub.f32 %v433, %v666
        %v672 = vsub.f32 %v439, %v668
        %v673 = vmin.f32 %v671, %v672
        %v674 = vmin.f32 %v670, %v673
        %vm675 = vcmp.gt.f32.partialorder %v674, 1e-09
        %v676 = vsel %vm675, 1, 0
        %v677 = vcvt.s32.f32 %v676
        %v678 = vmul.f32 %v665, %v677
        %v679 = vlaneseq
        %v680 = vshrl.u32 %v679, 7
        %vm681 = vcmask 523264
        %v682 = vsel %vm681, %v678, -inf
        %683 = vmax.xlane.f32.xlu0 %v682
        %v684 = vpop.xlane.xlu0 %683
        %vm685 = vcmp.eq.f32.partialorder %v678, %v684
        %v686 = vsel %vm685, %v492, 64
        %v687 = vsel %vm681, %v686, 2147483647
        %v688 = vand.u32 %v687, 65535
        %v689 = vshra.s32 %v687, 16
        %v690 = vcvt.s32.f32 %v688
        %v691 = vcvt.s32.f32 %v689
        %692 = vmin.xlane.f32.xlu0 %v691
        %v693 = vpop.xlane.xlu0 %692
        %vm694 = vcmp.eq.f32.partialorder %v691, %v693
        %v695 = vsel %vm694, %v690, inf
        %696 = vmin.xlane.f32.xlu0 %v695
        %v697 = vpop.xlane.xlu0 %696
        %v698 = vcvt.f32.s32 %v697
        %v699 = vcvt.f32.s32 %v693
        %v700 = vshll.u32 %v699, 16
        %v701 = vadd.s32 %v700, %v698
        %vm702 = vcmp.eq.s32.totalorder %v492, %v701
        %v703 = vsel %vm702, 1, 0
        %v704 = vcvt.s32.f32 %v703
        %vm705 = vcmp.gt.f32.partialorder %v704, 0.0
        %v706 = vsel %vm705, -1e+30, %v678
        %v707 = vadd.f32 %v704, 0.0
        %v708 = vsel %vm681, %v706, -inf
        %709 = vmax.xlane.f32.xlu0 %v708
        %v710 = vpop.xlane.xlu0 %709
        %vm711 = vcmp.eq.f32.partialorder %v706, %v710
        %v712 = vsel %vm711, %v492, 64
        %v713 = vsel %vm681, %v712, 2147483647
        %v714 = vand.u32 %v713, 65535
        %v715 = vshra.s32 %v713, 16
        %v716 = vcvt.s32.f32 %v714
        %v717 = vcvt.s32.f32 %v715
        %718 = vmin.xlane.f32.xlu0 %v717
        %v719 = vpop.xlane.xlu0 %718
        %vm720 = vcmp.eq.f32.partialorder %v717, %v719
        %v721 = vsel %vm720, %v716, inf
        %722 = vmin.xlane.f32.xlu0 %v721
        %v723 = vpop.xlane.xlu0 %722
        %v724 = vcvt.f32.s32 %v723
        %v725 = vcvt.f32.s32 %v719
        %v726 = vshll.u32 %v725, 16
        %v727 = vadd.s32 %v726, %v724
        %vm728 = vcmp.eq.s32.totalorder %v492, %v727
        %v729 = vsel %vm728, 1, 0
        %v730 = vcvt.s32.f32 %v729
        %vm731 = vcmp.gt.f32.partialorder %v730, 0.0
        %v732 = vsel %vm731, -1e+30, %v706
        %v733 = vadd.f32 %v707, %v730
        %v734 = vsel %vm681, %v732, -inf
        %735 = vmax.xlane.f32.xlu0 %v734
        %v736 = vpop.xlane.xlu0 %735
        %vm737 = vcmp.eq.f32.partialorder %v732, %v736
        %v738 = vsel %vm737, %v492, 64
        %v739 = vsel %vm681, %v738, 2147483647
        %v740 = vand.u32 %v739, 65535
        %v741 = vshra.s32 %v739, 16
        %v742 = vcvt.s32.f32 %v740
        %v743 = vcvt.s32.f32 %v741
        %744 = vmin.xlane.f32.xlu0 %v743
        %v745 = vpop.xlane.xlu0 %744
        %vm746 = vcmp.eq.f32.partialorder %v743, %v745
        %v747 = vsel %vm746, %v742, inf
        %748 = vmin.xlane.f32.xlu0 %v747
        %v749 = vpop.xlane.xlu0 %748
        %v750 = vcvt.f32.s32 %v749
        %v751 = vcvt.f32.s32 %v745
        %v752 = vshll.u32 %v751, 16
        %v753 = vadd.s32 %v752, %v750
        %vm754 = vcmp.eq.s32.totalorder %v492, %v753
        %v755 = vsel %vm754, 1, 0
        %v756 = vcvt.s32.f32 %v755
        %vm757 = vcmp.gt.f32.partialorder %v756, 0.0
        %v758 = vsel %vm757, -1e+30, %v732
        %v759 = vadd.f32 %v733, %v756
        %v760 = vsel %vm681, %v758, -inf
        %761 = vmax.xlane.f32.xlu0 %v760
        %v762 = vpop.xlane.xlu0 %761
        %vm763 = vcmp.eq.f32.partialorder %v758, %v762
        %v764 = vsel %vm763, %v492, 64
        %v765 = vsel %vm681, %v764, 2147483647
        %v766 = vand.u32 %v765, 65535
        %v767 = vshra.s32 %v765, 16
        %v768 = vcvt.s32.f32 %v766
        %v769 = vcvt.s32.f32 %v767
        %770 = vmin.xlane.f32.xlu0 %v769
        %v771 = vpop.xlane.xlu0 %770
        %vm772 = vcmp.eq.f32.partialorder %v769, %v771
        %v773 = vsel %vm772, %v768, inf
        %774 = vmin.xlane.f32.xlu0 %v773
        %v775 = vpop.xlane.xlu0 %774
        %v776 = vcvt.f32.s32 %v775
        %v777 = vcvt.f32.s32 %v771
        %v778 = vshll.u32 %v777, 16
        %v779 = vadd.s32 %v778, %v776
        %vm780 = vcmp.eq.s32.totalorder %v492, %v779
        %v781 = vsel %vm780, 1, 0
        %v782 = vcvt.s32.f32 %v781
        %vm783 = vcmp.gt.f32.partialorder %v782, 0.0
        %v784 = vsel %vm783, -1e+30, %v758
        %v785 = vadd.f32 %v759, %v782
        %v786 = vsel %vm681, %v784, -inf
        %787 = vmax.xlane.f32.xlu0 %v786
        %v788 = vpop.xlane.xlu0 %787
        %vm789 = vcmp.eq.f32.partialorder %v784, %v788
        %v790 = vsel %vm789, %v492, 64
        %v791 = vsel %vm681, %v790, 2147483647
        %v792 = vand.u32 %v791, 65535
        %v793 = vshra.s32 %v791, 16
        %v794 = vcvt.s32.f32 %v792
        %v795 = vcvt.s32.f32 %v793
        %796 = vmin.xlane.f32.xlu0 %v795
        %v797 = vpop.xlane.xlu0 %796
        %vm798 = vcmp.eq.f32.partialorder %v795, %v797
        %v799 = vsel %vm798, %v794, inf
        %800 = vmin.xlane.f32.xlu0 %v799
        %v801 = vpop.xlane.xlu0 %800
        %v802 = vcvt.f32.s32 %v801
        %v803 = vcvt.f32.s32 %v797
        %v804 = vshll.u32 %v803, 16
        %v805 = vadd.s32 %v804, %v802
        %vm806 = vcmp.eq.s32.totalorder %v492, %v805
        %v807 = vsel %vm806, 1, 0
        %v808 = vcvt.s32.f32 %v807
        %vm809 = vcmp.gt.f32.partialorder %v808, 0.0
        %v810 = vsel %vm809, -1e+30, %v784
        %v811 = vadd.f32 %v785, %v808
        %v812 = vsel %vm681, %v810, -inf
        %813 = vmax.xlane.f32.xlu0 %v812
        %v814 = vpop.xlane.xlu0 %813
        %vm815 = vcmp.eq.f32.partialorder %v810, %v814
        %v816 = vsel %vm815, %v492, 64
        %v817 = vsel %vm681, %v816, 2147483647
        %v818 = vand.u32 %v817, 65535
        %v819 = vshra.s32 %v817, 16
        %v820 = vcvt.s32.f32 %v818
        %v821 = vcvt.s32.f32 %v819
        %822 = vmin.xlane.f32.xlu0 %v821
        %v823 = vpop.xlane.xlu0 %822
        %vm824 = vcmp.eq.f32.partialorder %v821, %v823
        %v825 = vsel %vm824, %v820, inf
        %826 = vmin.xlane.f32.xlu0 %v825
        %v827 = vpop.xlane.xlu0 %826
        %v828 = vcvt.f32.s32 %v827
        %v829 = vcvt.f32.s32 %v823
        %v830 = vshll.u32 %v829, 16
        %v831 = vadd.s32 %v830, %v828
        %vm832 = vcmp.eq.s32.totalorder %v492, %v831
        %v833 = vsel %vm832, 1, 0
        %v834 = vcvt.s32.f32 %v833
        %vm835 = vcmp.gt.f32.partialorder %v834, 0.0
        %v836 = vsel %vm835, -1e+30, %v810
        %v837 = vadd.f32 %v811, %v834
        %v838 = vsel %vm681, %v836, -inf
        %839 = vmax.xlane.f32.xlu0 %v838
        %v840 = vpop.xlane.xlu0 %839
        %vm841 = vcmp.eq.f32.partialorder %v836, %v840
        %v842 = vsel %vm841, %v492, 64
        %v843 = vsel %vm681, %v842, 2147483647
        %v844 = vand.u32 %v843, 65535
        %v845 = vshra.s32 %v843, 16
        %v846 = vcvt.s32.f32 %v844
        %v847 = vcvt.s32.f32 %v845
        %848 = vmin.xlane.f32.xlu0 %v847
        %v849 = vpop.xlane.xlu0 %848
        %vm850 = vcmp.eq.f32.partialorder %v847, %v849
        %v851 = vsel %vm850, %v846, inf
        %852 = vmin.xlane.f32.xlu0 %v851
        %v853 = vpop.xlane.xlu0 %852
        %v854 = vcvt.f32.s32 %v853
        %v855 = vcvt.f32.s32 %v849
        %v856 = vshll.u32 %v855, 16
        %v857 = vadd.s32 %v856, %v854
        %vm858 = vcmp.eq.s32.totalorder %v492, %v857
        %v859 = vsel %vm858, 1, 0
        %v860 = vcvt.s32.f32 %v859
        %vm861 = vcmp.gt.f32.partialorder %v860, 0.0
        %v862 = vsel %vm861, -1e+30, %v836
        %v863 = vadd.f32 %v837, %v860
        %v864 = vsel %vm681, %v862, -inf
        %865 = vmax.xlane.f32.xlu0 %v864
        %v866 = vpop.xlane.xlu0 %865
        %vm867 = vcmp.eq.f32.partialorder %v862, %v866
        %v868 = vsel %vm867, %v492, 64
        %v869 = vsel %vm681, %v868, 2147483647
        %v870 = vand.u32 %v869, 65535
        %v871 = vshra.s32 %v869, 16
        %v872 = vcvt.s32.f32 %v870
        %v873 = vcvt.s32.f32 %v871
        %874 = vmin.xlane.f32.xlu0 %v873
        %v875 = vpop.xlane.xlu0 %874
        %vm876 = vcmp.eq.f32.partialorder %v873, %v875
        %v877 = vsel %vm876, %v872, inf
        %878 = vmin.xlane.f32.xlu0 %v877
        %v879 = vpop.xlane.xlu0 %878
        %v880 = vcvt.f32.s32 %v879
        %v881 = vcvt.f32.s32 %v875
        %v882 = vshll.u32 %v881, 16
        %v883 = vadd.s32 %v882, %v880
        %vm884 = vcmp.eq.s32.totalorder %v492, %v883
        %v885 = vsel %vm884, 1, 0
        %v886 = vcvt.s32.f32 %v885
        %vm887 = vcmp.gt.f32.partialorder %v886, 0.0
        %v888 = vsel %vm887, -1e+30, %v862
        %v889 = vadd.f32 %v863, %v886
        %v890 = vsel %vm681, %v888, -inf
        %891 = vmax.xlane.f32.xlu0 %v890
        %v892 = vpop.xlane.xlu0 %891
        %vm893 = vcmp.eq.f32.partialorder %v888, %v892
        %v894 = vsel %vm893, %v492, 64
        %v895 = vsel %vm681, %v894, 2147483647
        %v896 = vand.u32 %v895, 65535
        %v897 = vshra.s32 %v895, 16
        %v898 = vcvt.s32.f32 %v896
        %v899 = vcvt.s32.f32 %v897
        %900 = vmin.xlane.f32.xlu0 %v899
        %v901 = vpop.xlane.xlu0 %900
        %vm902 = vcmp.eq.f32.partialorder %v899, %v901
        %v903 = vsel %vm902, %v898, inf
        %904 = vmin.xlane.f32.xlu0 %v903
        %v905 = vpop.xlane.xlu0 %904
        %v906 = vcvt.f32.s32 %v905
        %v907 = vcvt.f32.s32 %v901
        %v908 = vshll.u32 %v907, 16
        %v909 = vadd.s32 %v908, %v906
        %vm910 = vcmp.eq.s32.totalorder %v492, %v909
        %v911 = vsel %vm910, 1, 0
        %v912 = vcvt.s32.f32 %v911
        %vm913 = vcmp.gt.f32.partialorder %v912, 0.0
        %v914 = vsel %vm913, -1e+30, %v888
        %v915 = vadd.f32 %v889, %v912
        %v916 = vsel %vm681, %v914, -inf
        %917 = vmax.xlane.f32.xlu0 %v916
        %v918 = vpop.xlane.xlu0 %917
        %vm919 = vcmp.eq.f32.partialorder %v914, %v918
        %v920 = vsel %vm919, %v492, 64
        %v921 = vsel %vm681, %v920, 2147483647
        %v922 = vand.u32 %v921, 65535
        %v923 = vshra.s32 %v921, 16
        %v924 = vcvt.s32.f32 %v922
        %v925 = vcvt.s32.f32 %v923
        %926 = vmin.xlane.f32.xlu0 %v925
        %v927 = vpop.xlane.xlu0 %926
        %vm928 = vcmp.eq.f32.partialorder %v925, %v927
        %v929 = vsel %vm928, %v924, inf
        %930 = vmin.xlane.f32.xlu0 %v929
        %v931 = vpop.xlane.xlu0 %930
        %v932 = vcvt.f32.s32 %v931
        %v933 = vcvt.f32.s32 %v927
        %v934 = vshll.u32 %v933, 16
        %v935 = vadd.s32 %v934, %v932
        %vm936 = vcmp.eq.s32.totalorder %v492, %v935
        %v937 = vsel %vm936, 1, 0
        %v938 = vcvt.s32.f32 %v937
        %vm939 = vcmp.gt.f32.partialorder %v938, 0.0
        %v940 = vsel %vm939, -1e+30, %v914
        %v941 = vadd.f32 %v915, %v938
        %v942 = vsel %vm681, %v940, -inf
        %943 = vmax.xlane.f32.xlu0 %v942
        %v944 = vpop.xlane.xlu0 %943
        %vm945 = vcmp.eq.f32.partialorder %v940, %v944
        %v946 = vsel %vm945, %v492, 64
        %v947 = vsel %vm681, %v946, 2147483647
        %v948 = vand.u32 %v947, 65535
        %v949 = vshra.s32 %v947, 16
        %v950 = vcvt.s32.f32 %v948
        %v951 = vcvt.s32.f32 %v949
        %952 = vmin.xlane.f32.xlu0 %v951
        %v953 = vpop.xlane.xlu0 %952
        %vm954 = vcmp.eq.f32.partialorder %v951, %v953
        %v955 = vsel %vm954, %v950, inf
        %956 = vmin.xlane.f32.xlu0 %v955
        %v957 = vpop.xlane.xlu0 %956
        %v958 = vcvt.f32.s32 %v957
        %v959 = vcvt.f32.s32 %v953
        %v960 = vshll.u32 %v959, 16
        %v961 = vadd.s32 %v960, %v958
        %vm962 = vcmp.eq.s32.totalorder %v492, %v961
        %v963 = vsel %vm962, 1, 0
        %v964 = vcvt.s32.f32 %v963
        %vm965 = vcmp.gt.f32.partialorder %v964, 0.0
        %v966 = vsel %vm965, -1e+30, %v940
        %v967 = vadd.f32 %v941, %v964
        %v968 = vsel %vm681, %v966, -inf
        %969 = vmax.xlane.f32.xlu0 %v968
        %v970 = vpop.xlane.xlu0 %969
        %vm971 = vcmp.eq.f32.partialorder %v966, %v970
        %v972 = vsel %vm971, %v492, 64
        %v973 = vsel %vm681, %v972, 2147483647
        %v974 = vand.u32 %v973, 65535
        %v975 = vshra.s32 %v973, 16
        %v976 = vcvt.s32.f32 %v974
        %v977 = vcvt.s32.f32 %v975
        %978 = vmin.xlane.f32.xlu0 %v977
        %v979 = vpop.xlane.xlu0 %978
        %vm980 = vcmp.eq.f32.partialorder %v977, %v979
        %v981 = vsel %vm980, %v976, inf
        %982 = vmin.xlane.f32.xlu0 %v981
        %v983 = vpop.xlane.xlu0 %982
        %v984 = vcvt.f32.s32 %v983
        %v985 = vcvt.f32.s32 %v979
        %v986 = vshll.u32 %v985, 16
        %v987 = vadd.s32 %v986, %v984
        %vm988 = vcmp.eq.s32.totalorder %v492, %v987
        %v989 = vsel %vm988, 1, 0
        %v990 = vcvt.s32.f32 %v989
        %vm991 = vcmp.gt.f32.partialorder %v990, 0.0
        %v992 = vsel %vm991, -1e+30, %v966
        %v993 = vadd.f32 %v967, %v990
        %v994 = vsel %vm681, %v992, -inf
        %995 = vmax.xlane.f32.xlu0 %v994
        %v996 = vpop.xlane.xlu0 %995
        %vm997 = vcmp.eq.f32.partialorder %v992, %v996
        %v998 = vsel %vm997, %v492, 64
        %v999 = vsel %vm681, %v998, 2147483647
        %v1000 = vand.u32 %v999, 65535
        %v1001 = vshra.s32 %v999, 16
        %v1002 = vcvt.s32.f32 %v1000
        %v1003 = vcvt.s32.f32 %v1001
        %1004 = vmin.xlane.f32.xlu0 %v1003
        %v1005 = vpop.xlane.xlu0 %1004
        %vm1006 = vcmp.eq.f32.partialorder %v1003, %v1005
        %v1007 = vsel %vm1006, %v1002, inf
        %1008 = vmin.xlane.f32.xlu0 %v1007
        %v1009 = vpop.xlane.xlu0 %1008
        %v1010 = vcvt.f32.s32 %v1009
        %v1011 = vcvt.f32.s32 %v1005
        %v1012 = vshll.u32 %v1011, 16
        %v1013 = vadd.s32 %v1012, %v1010
        %vm1014 = vcmp.eq.s32.totalorder %v492, %v1013
        %v1015 = vsel %vm1014, 1, 0
        %v1016 = vcvt.s32.f32 %v1015
        %v1017 = vadd.f32 %v993, %v1016
        %vm1018 = vcmp.ne.f32.partialorder %v413, 0.0
        %v1019 = vsel %vm1018, 1, 0
        %v1020 = vcvt.s32.f32 %v1019
        %1022 = vset.pattern.permute.xlu0 5
        %1023 = vperm.xlu0 %1022, %v1020
        %v1024 = vpop.permute.xlu0 %1023
        %v1026 = vmul.f32 %v1017, %v1024
        %v1027 = vmul.f32 %v1026, %v677
        %1028 = vset.pattern.permute.xlu0 5
        %1029 = vperm.xlu0 %1028, %v413
        %v1030 = vpop.permute.xlu0 %1029
        %v1032 = vmul.f32 %v1027, %v1030
        %v1033 = vsel %vm681, %v1032, 0.0
        %v1034 = vrot.slane %v1033, 4
        %v1035 = vadd.f32 %v1033, %v1034
        %v1036 = vrot.slane %v1035, 2
        %v1037 = vadd.f32 %v1035, %v1036
        %v1038 = vrot.slane %v1037, 1
        %v1039 = vadd.f32 %v1037, %v1038
        %v1040 = vsel %vm681, %v490, -inf
        %v1041 = vrot.slane %v1040, 4
        %v1042 = vmax.f32 %v1040, %v1041
        %v1043 = vrot.slane %v1042, 2
        %v1044 = vmax.f32 %v1042, %v1043
        %v1045 = vrot.slane %v1044, 1
        %v1046 = vmax.f32 %v1044, %v1045
        %vm1047 = vcmp.eq.f32.partialorder %v490, %v1046
        %v1048 = vsel %vm1047, %v680, 8
        %v1049 = vsel %vm681, %v1048, 2147483647
        %v1050 = vrot.slane %v1049, 4
        %vm1051 = vcmp.lt.s32.totalorder %v1049, %v1050
        %v1052 = vsel %vm1051, %v1049, %v1050
        %v1053 = vrot.slane %v1052, 2
        %vm1054 = vcmp.lt.s32.totalorder %v1052, %v1053
        %v1055 = vsel %vm1054, %v1052, %v1053
        %v1056 = vrot.slane %v1055, 1
        %vm1057 = vcmp.lt.s32.totalorder %v1055, %v1056
        %v1058 = vsel %vm1057, %v1055, %v1056
        %vm1059 = vcmp.eq.s32.totalorder %v680, %v1058
        %v1060 = vsel %vm1059, 1, 0
        %v1061 = vcvt.s32.f32 %v1060
        %vm1062 = vcmp.gt.f32.partialorder %v1039, 1.0
        %v1063 = vsel %vm1062, 1, 0
        %vm1064 = vcmp.eq.s32.totalorder %v1063, 1
        %v1065 = vsel %vm1064, %v1061, %v1032
        %v1066 = vsel %vm681, %v1065, 0.0
        %v1067 = vrot.slane %v1066, 4
        %v1068 = vadd.f32 %v1066, %v1067
        %v1069 = vrot.slane %v1068, 2
        %v1070 = vadd.f32 %v1068, %v1069
        %v1071 = vrot.slane %v1070, 1
        %v1072 = vadd.f32 %v1070, %v1071
        %v1073 = vsel %vm681, %v1065, -inf
        %v1074 = vrot.slane %v1073, 4
        %v1075 = vmax.f32 %v1073, %v1074
        %v1076 = vrot.slane %v1075, 2
        %v1077 = vmax.f32 %v1075, %v1076
        %v1078 = vrot.slane %v1077, 1
        %v1079 = vmax.f32 %v1077, %v1078
        %vm1080 = vcmp.eq.f32.partialorder %v1065, %v1079
        %v1081 = vsel %vm1080, %v680, 8
        %v1082 = vsel %vm681, %v1081, 2147483647
        %v1083 = vrot.slane %v1082, 4
        %vm1084 = vcmp.lt.s32.totalorder %v1082, %v1083
        %v1085 = vsel %vm1084, %v1082, %v1083
        %v1086 = vrot.slane %v1085, 2
        %vm1087 = vcmp.lt.s32.totalorder %v1085, %v1086
        %v1088 = vsel %vm1087, %v1085, %v1086
        %v1089 = vrot.slane %v1088, 1
        %vm1090 = vcmp.lt.s32.totalorder %v1088, %v1089
        %v1091 = vsel %vm1090, %v1088, %v1089
        %vm1092 = vcmp.eq.s32.totalorder %v680, %v1091
        %v1093 = vsel %vm1092, 1, 0
        %v1094 = vcvt.s32.f32 %v1093
        %vm1095 = vcmask 64512
        %v1097 = vsel %vm1095, %v414, 0
        %1099 = vmatpush.msra.mxu0 0.0
        %1100 = vmatpush.msra.mxu0 0.0
        %1101 = vmatpush.msra.mxu0 0.0
        %1102 = vmatpush.msra.mxu0 0.0
        %1103 = vmatpush.msra.mxu0 0.0
        %1104 = vmatpush.msra.mxu0 0.0
        %1105 = vmatpush.msra.mxu0 0.0
        %1106 = vmatpush.msra.mxu0 0.0
        %1107 = vmatpush.msra.mxu0 0.0
        %1108 = vmatpush.msra.mxu0 0.0
        %1109 = vmatpush.msra.mxu0 0.0
        %1110 = vmatpush.msra.mxu0 0.0
        %1111 = vmatpush.msra.mxu0 0.0
        %1112 = vmatpush.msra.mxu0 0.0
        %1113 = vmatpush.msra.mxu0 0.0
        %v1114 = vand.u32 %v1094, 4294901760
        %1115 = vmatpush.msra.mxu0 %v1114
        %v1116 = vand.u32 %v1097, 4294901760
        %v1117 = vsub.f32 %v1097, %v1116
        %v1118 = vand.u32 %v1117, 4294901760
        %v1119 = vsub.f32 %v1117, %v1118
        %v1120 = vand.u32 %v1119, 4294901760
        %1121 = vmatmul.f32.gmra.mxu0 %v1120
        %v1122 = vpop.f32.mrf.mxu0
        %v1123 = vadd.f32 0.0, %v1122
        %1124 = vdwg.mxu0
        %1125 = vmatpush.msra.mxu0 0.0
        %1126 = vmatpush.msra.mxu0 0.0
        %1127 = vmatpush.msra.mxu0 0.0
        %1128 = vmatpush.msra.mxu0 0.0
        %1129 = vmatpush.msra.mxu0 0.0
        %1130 = vmatpush.msra.mxu0 0.0
        %1131 = vmatpush.msra.mxu0 0.0
        %1132 = vmatpush.msra.mxu0 0.0
        %1133 = vmatpush.msra.mxu0 0.0
        %1134 = vmatpush.msra.mxu0 0.0
        %1135 = vmatpush.msra.mxu0 0.0
        %1136 = vmatpush.msra.mxu0 0.0
        %1137 = vmatpush.msra.mxu0 0.0
        %1138 = vmatpush.msra.mxu0 0.0
        %1139 = vmatpush.msra.mxu0 0.0
        %v1140 = vand.u32 %v1094, 4294901760
        %v1141 = vsub.f32 %v1094, %v1140
        %v1142 = vand.u32 %v1141, 4294901760
        %v1143 = vsub.f32 %v1141, %v1142
        %v1144 = vand.u32 %v1143, 4294901760
        %1145 = vmatpush.msra.mxu0 %v1144
        %v1146 = vand.u32 %v1097, 4294901760
        %1147 = vmatmul.f32.gmra.mxu0 %v1146
        %v1148 = vpop.f32.mrf.mxu0
        %v1149 = vadd.f32 %v1123, %v1148
        %1150 = vdwg.mxu0
        %1151 = vmatpush.msra.mxu0 0.0
        %1152 = vmatpush.msra.mxu0 0.0
        %1153 = vmatpush.msra.mxu0 0.0
        %1154 = vmatpush.msra.mxu0 0.0
        %1155 = vmatpush.msra.mxu0 0.0
        %1156 = vmatpush.msra.mxu0 0.0
        %1157 = vmatpush.msra.mxu0 0.0
        %1158 = vmatpush.msra.mxu0 0.0
        %1159 = vmatpush.msra.mxu0 0.0
        %1160 = vmatpush.msra.mxu0 0.0
        %1161 = vmatpush.msra.mxu0 0.0
        %1162 = vmatpush.msra.mxu0 0.0
        %1163 = vmatpush.msra.mxu0 0.0
        %1164 = vmatpush.msra.mxu0 0.0
        %1165 = vmatpush.msra.mxu0 0.0
        %v1166 = vand.u32 %v1094, 4294901760
        %v1167 = vsub.f32 %v1094, %v1166
        %1168 = vmatpush.msra.mxu0 %v1167
        %v1169 = vand.u32 %v1097, 4294901760
        %v1170 = vsub.f32 %v1097, %v1169
        %1171 = vmatmul.f32.gmra.mxu0 %v1170
        %v1172 = vpop.f32.mrf.mxu0
        %v1173 = vadd.f32 %v1149, %v1172
        %1174 = vdwg.mxu0
        %1175 = vmatpush.msra.mxu0 0.0
        %1176 = vmatpush.msra.mxu0 0.0
        %1177 = vmatpush.msra.mxu0 0.0
        %1178 = vmatpush.msra.mxu0 0.0
        %1179 = vmatpush.msra.mxu0 0.0
        %1180 = vmatpush.msra.mxu0 0.0
        %1181 = vmatpush.msra.mxu0 0.0
        %1182 = vmatpush.msra.mxu0 0.0
        %1183 = vmatpush.msra.mxu0 0.0
        %1184 = vmatpush.msra.mxu0 0.0
        %1185 = vmatpush.msra.mxu0 0.0
        %1186 = vmatpush.msra.mxu0 0.0
        %1187 = vmatpush.msra.mxu0 0.0
        %1188 = vmatpush.msra.mxu0 0.0
        %1189 = vmatpush.msra.mxu0 0.0
        %v1190 = vand.u32 %v1094, 4294901760
        %1191 = vmatpush.msra.mxu0 %v1190
        %v1192 = vand.u32 %v1097, 4294901760
        %v1193 = vsub.f32 %v1097, %v1192
        %v1194 = vand.u32 %v1193, 4294901760
        %1195 = vmatmul.f32.gmra.mxu0 %v1194
        %v1196 = vpop.f32.mrf.mxu0
        %v1197 = vadd.f32 %v1173, %v1196
        %1198 = vdwg.mxu0
        %1199 = vmatpush.msra.mxu0 0.0
        %1200 = vmatpush.msra.mxu0 0.0
        %1201 = vmatpush.msra.mxu0 0.0
        %1202 = vmatpush.msra.mxu0 0.0
        %1203 = vmatpush.msra.mxu0 0.0
        %1204 = vmatpush.msra.mxu0 0.0
        %1205 = vmatpush.msra.mxu0 0.0
        %1206 = vmatpush.msra.mxu0 0.0
        %1207 = vmatpush.msra.mxu0 0.0
        %1208 = vmatpush.msra.mxu0 0.0
        %1209 = vmatpush.msra.mxu0 0.0
        %1210 = vmatpush.msra.mxu0 0.0
        %1211 = vmatpush.msra.mxu0 0.0
        %1212 = vmatpush.msra.mxu0 0.0
        %1213 = vmatpush.msra.mxu0 0.0
        %v1214 = vand.u32 %v1094, 4294901760
        %v1215 = vsub.f32 %v1094, %v1214
        %v1216 = vand.u32 %v1215, 4294901760
        %1217 = vmatpush.msra.mxu0 %v1216
        %v1218 = vand.u32 %v1097, 4294901760
        %1219 = vmatmul.f32.gmra.mxu0 %v1218
        %v1220 = vpop.f32.mrf.mxu0
        %v1221 = vadd.f32 %v1197, %v1220
        %1222 = vdwg.mxu0
        %1223 = vmatpush.msra.mxu0 0.0
        %1224 = vmatpush.msra.mxu0 0.0
        %1225 = vmatpush.msra.mxu0 0.0
        %1226 = vmatpush.msra.mxu0 0.0
        %1227 = vmatpush.msra.mxu0 0.0
        %1228 = vmatpush.msra.mxu0 0.0
        %1229 = vmatpush.msra.mxu0 0.0
        %1230 = vmatpush.msra.mxu0 0.0
        %1231 = vmatpush.msra.mxu0 0.0
        %1232 = vmatpush.msra.mxu0 0.0
        %1233 = vmatpush.msra.mxu0 0.0
        %1234 = vmatpush.msra.mxu0 0.0
        %1235 = vmatpush.msra.mxu0 0.0
        %1236 = vmatpush.msra.mxu0 0.0
        %1237 = vmatpush.msra.mxu0 0.0
        %v1238 = vand.u32 %v1094, 4294901760
        %1239 = vmatpush.msra.mxu0 %v1238
        %v1240 = vand.u32 %v1097, 4294901760
        %1241 = vmatmul.f32.gmra.mxu0 %v1240
        %v1242 = vpop.f32.mrf.mxu0
        %v1243 = vadd.f32 %v1221, %v1242
        %1244 = vdwg.mxu0
        %v1245 = vadd.f32 %v1243, 0.5
        %v1246 = vcvt.f32.s32.to.zero.pseudo %v1245
        %vm1247 = vcmp.gt.f32.partialorder %v1072, 0.0
        %v1248 = vsel %vm1247, %v1246, 16
        %1249 = vset.pattern.permute.xlu0 0
        %1250 = vperm.xlu0 %1249, %v415
        %v1251 = vpop.permute.xlu0 %1250
        %1252 = vset.pattern.permute.xlu0 0
        %1253 = vperm.xlu0 %1252, %v416
        %v1254 = vpop.permute.xlu0 %1253
        %v1255 = vperm.slane %v1248, 4
        %vm1256 = vcmp.eq.s32.totalorder %v1251, %v1255
        %vm1257 = vcmp.eq.s32.totalorder %v1254, %v1255
        %v1258 = vsel %vm1256, 1, 0
        %v1259 = vsel %vm1257, 1, 0
        %v1260 = vcvt.s32.f32 %v1258
        %v1261 = vcvt.s32.f32 %v1259
        %v1262 = vmul.f32 %v665, %v1065
        %v1263 = vsel %vm681, %v1262, -inf
        %1264 = vmax.xlane.f32.xlu0 %v1263
        %v1265 = vpop.xlane.xlu0 %1264
        %v1266 = vmul.f32 %v490, %v1065
        %v1267 = vsel %vm681, %v1266, -inf
        %1268 = vmax.xlane.f32.xlu0 %v1267
        %v1269 = vpop.xlane.xlu0 %1268
        %v1270 = vadd.f32 %v1265, 1e-09
        %v1271 = vrcp.pop %v1270
        %v1272 = vmul.f32 %v1270, %v1271
        %v1273 = vsub.f32 1.0, %v1272
        %v1274 = vmul.f32 %v1271, %v1273
        %v1275 = vadd.f32 %v1271, %v1274
        %vm1276 = vweird.f32 %v1270
        %vm1277 = vweird.f32 %v1271
        %vm1278 = vmor %vm1276, %vm1277
        %v1279 = vsel %vm1278, %v1271, %v1275
        %v1280 = vand.u32 2147483647, %v1270
        %vm1281 = vcmp.eq.f32.partialorder %v1280, 8.507059e+37
        %v1282 = vand.u32 %v1270, 2147483648
        %v1283 = vor.u32 1.1754944e-38, %v1282
        %v1284 = vsel %vm1281, %v1283, %v1279
        %v1285 = vmul.f32 %v1269, %v1284
        %v1286 = vmul.f32 %v1262, %v1285
        %v1287 = vsel %vm681, %v1286, -inf
        %v1288 = vrot.slane %v1287, 4
        %v1289 = vmax.f32 %v1287, %v1288
        %v1290 = vrot.slane %v1289, 2
        %v1291 = vmax.f32 %v1289, %v1290
        %v1292 = vrot.slane %v1291, 1
        %v1293 = vmax.f32 %v1291, %v1292
        %vm1294 = vcmask 520196
        %1295 = vst.msk [vmem:[%s370 - $0x4] sm:$0x10] %vm1294, %v1248
        %vm1296 = vcmask 519168
        %1297 = vst.msk [vmem:[%s377] sm:$0xf] %vm1296, %v1243
        %v1298 = vmul.f32 %v1260, %v1293
        %v1299 = vmul.f32 %v1261, %v1293
        %1300 = vst.msk [vmem:[%s384] sm:$0xff] %vm681, %v1298
        %1301 = vst.msk [vmem:[%s384 + $0x8] sm:$0xff] %vm681, %v1299
        %1302 = vst.msk [vmem:[%s391] sm:$0xff] %vm681, %v1065
        %s1303 = sand.u32 %s184, 1
        %s1304 = scalar_lea.sflag [#allocation3], %s1303
        %s1305 = sand.u32 %s184, 1
        %s1306 = scalar_lea.vmem [#allocation2], %s1305
        %s1307 = sand.u32 %s30, 1
        %s1308 = scalar_lea.sflag [#allocation5], %s1307
        %s1309 = sand.u32 %s210, 1
        %s1310 = smul.addr %s1309, 4
        %s1311 = scalar_lea.vmem [#allocation4], %s1310
        %s1312 = sand.u32 %s30, 1
        %s1313 = scalar_lea.sflag [#allocation5], %s1312
        %s1314 = sand.u32 %s236, 1
        %s1315 = smul.addr %s1314, 16
        %s1316 = scalar_lea.vmem [#allocation6], %s1315
        %s1317 = sand.u32 %s262, 1
        %s1318 = scalar_lea.sflag [#allocation8], %s1317
        %s1319 = sand.u32 %s262, 1
        %s1320 = smul.addr %s1319, 8
        %s1321 = scalar_lea.vmem [#allocation7], %s1320
        // Predicated region
        $region45: #{tpu_custom_call.1} parent=43 // pred_check
          %p1322 = pneg %p194
        $region46: #{tpu_custom_call.1} parent=43 // pred_check_branch
          %1324 = sbr.rel (%p1322) target = $region48
        $region47: #{tpu_custom_call.1} parent=43 // pred_region
          %1326 = vsyncadd %s1304, 0
          %s1327 = scalar_lea.hbm %s6, %s30
          %s1329 = sshll.u32 %s1306, 4
          %s1330 = int_to_ptr.vmem [resolvable:$true] %s1329
          %s1331 = sshll.u32 %s1327, 4
          %s1332 = int_to_ptr.hbm [resolvable:$true] %s1331
          %1334 = dma.vmem_to_hbm [thread:$0]  %s1330, 16, %s1332, %s1304
        $region48: #{tpu_custom_call.1} parent=43 // pred_fallthru
          _
        // Predicated region
        $region49: #{tpu_custom_call.1} parent=43 // pred_check
          %p1335 = pneg %p220
        $region50: #{tpu_custom_call.1} parent=43 // pred_check_branch
          %1337 = sbr.rel (%p1335) target = $region52
        $region51: #{tpu_custom_call.1} parent=43 // pred_region
          %1339 = vsyncadd %s1308, 0
          %s1340 = smul.addr %s30, 4
          %s1341 = scalar_lea.hbm %s7, %s1340
          %s1343 = sshll.u32 %s1311, 4
          %s1344 = int_to_ptr.vmem [resolvable:$true] %s1343
          %s1345 = sshll.u32 %s1341, 4
          %s1346 = int_to_ptr.hbm [resolvable:$true] %s1345
          %1348 = dma.vmem_to_hbm [thread:$0]  %s1344, 64, %s1346, %s1308
        $region52: #{tpu_custom_call.1} parent=43 // pred_fallthru
          _
        // Predicated region
        $region53: #{tpu_custom_call.1} parent=43 // pred_check
          %p1349 = pneg %p246
        $region54: #{tpu_custom_call.1} parent=43 // pred_check_branch
          %1351 = sbr.rel (%p1349) target = $region56
        $region55: #{tpu_custom_call.1} parent=43 // pred_region
          %1353 = vsyncadd %s1313, 0
          %s1354 = smul.addr %s30, 2
          %s1355 = smul.addr %s1354, 8
          %s1356 = scalar_lea.hbm %s8, %s1355
          %s1357 = sshll.u32 %s1316, 4
          %s1358 = int_to_ptr.vmem [resolvable:$true] %s1357
          %s1359 = sshll.u32 %s1356, 4
          %s1360 = int_to_ptr.hbm [resolvable:$true] %s1359
          %1365 = dma.vmem_to_hbm [thread:$0]  %s1358, 256, %s1360, %s1313, 128, 128, 8
        $region56: #{tpu_custom_call.1} parent=43 // pred_fallthru
          _
        // Predicated region
        $region57: #{tpu_custom_call.1} parent=43 // pred_check
          %p1366 = pneg %p272
        $region58: #{tpu_custom_call.1} parent=43 // pred_check_branch
          %1368 = sbr.rel (%p1366) target = $region60
        $region59: #{tpu_custom_call.1} parent=43 // pred_region
          %1370 = vsyncadd %s1318, 0
          %s1371 = smul.addr %s30, 8
          %s1372 = scalar_lea.hbm %s9, %s1371
          %s1374 = sshll.u32 %s1321, 4
          %s1375 = int_to_ptr.vmem [resolvable:$true] %s1374
          %s1376 = sshll.u32 %s1372, 4
          %s1377 = int_to_ptr.hbm [resolvable:$true] %s1376
          %1379 = dma.vmem_to_hbm [thread:$0]  %s1375, 128, %s1377, %s1318
        $region60: #{tpu_custom_call.1} parent=43 // pred_fallthru
          _
      $region44: #{tpu_custom_call.1} parent=5 // pred_fallthru
        _
      %p1380 = scmp.le.s32.totalorder 2, %s25
      // Predicated region
      $region61: #{tpu_custom_call.1} parent=5 // pred_check
        %p1381 = pneg %p1380
      $region62: #{tpu_custom_call.1} parent=5 // pred_check_branch
        %1383 = sbr.rel (%p1381) target = $region64
      $region63: #{tpu_custom_call.1} parent=5 // pred_region
        %s1384 = ssub.s32 %s25, 2
        // Predicated region
        $region65: #{tpu_custom_call.1} parent=63 // pred_check
          %p1385 = pneg %p200
        $region66: #{tpu_custom_call.1} parent=63 // pred_check_branch
          %1387 = sbr.rel (%p1385) target = $region68
        $region67: #{tpu_custom_call.1} parent=63 // pred_region
          %s1388 = sand.u32 %s185, 1
          %s1389 = scalar_lea.sflag [#allocation3], %s1388
          %s1390 = sand.u32 %s185, 1
          %s1391 = scalar_lea.vmem [#allocation2], %s1390
          %1393 = dma.done %s1389, 16
        $region68: #{tpu_custom_call.1} parent=63 // pred_fallthru
          _
        // Predicated region
        $region69: #{tpu_custom_call.1} parent=63 // pred_check
          %p1394 = pneg %p226
        $region70: #{tpu_custom_call.1} parent=63 // pred_check_branch
          %1396 = sbr.rel (%p1394) target = $region72
        $region71: #{tpu_custom_call.1} parent=63 // pred_region
          %s1397 = sand.u32 %s31, 1
          %s1398 = scalar_lea.sflag [#allocation5], %s1397
          %s1399 = sand.u32 %s211, 1
          %s1400 = smul.addr %s1399, 4
          %s1401 = scalar_lea.vmem [#allocation4], %s1400
          %1403 = dma.done %s1398, 64
        $region72: #{tpu_custom_call.1} parent=63 // pred_fallthru
          _
        // Predicated region
        $region73: #{tpu_custom_call.1} parent=63 // pred_check
          %p1404 = pneg %p252
        $region74: #{tpu_custom_call.1} parent=63 // pred_check_branch
          %1406 = sbr.rel (%p1404) target = $region76
        $region75: #{tpu_custom_call.1} parent=63 // pred_region
          %s1407 = sand.u32 %s31, 1
          %s1408 = scalar_lea.sflag [#allocation5], %s1407
          %s1409 = sand.u32 %s237, 1
          %s1410 = smul.addr %s1409, 16
          %s1411 = scalar_lea.vmem [#allocation6], %s1410
          %1413 = dma.done %s1408, 256
        $region76: #{tpu_custom_call.1} parent=63 // pred_fallthru
          _
        // Predicated region
        $region77: #{tpu_custom_call.1} parent=63 // pred_check
          %p1414 = pneg %p278
        $region78: #{tpu_custom_call.1} parent=63 // pred_check_branch
          %1416 = sbr.rel (%p1414) target = $region80
        $region79: #{tpu_custom_call.1} parent=63 // pred_region
          %s1417 = sand.u32 %s263, 1
          %s1418 = scalar_lea.sflag [#allocation8], %s1417
          %s1419 = sand.u32 %s263, 1
          %s1420 = smul.addr %s1419, 8
          %s1421 = scalar_lea.vmem [#allocation7], %s1420
          %1423 = dma.done %s1418, 128
        $region80: #{tpu_custom_call.1} parent=63 // pred_fallthru
          _
      $region64: #{tpu_custom_call.1} parent=5 // pred_fallthru
        _
    $region6: #{tpu_custom_call.1} parent=1 // loop_footer
      %s29 = sadd.s32 1, %s25
    $region7: #{tpu_custom_call.1} parent=1 // loop_footer_branch
      %24 = sbr.rel target = $region3
    $region8: #{tpu_custom_call.1} parent=1 // loop_exit
      _
    %1424 = vsyncpa [#allocation3], 1
    %s1425 = scalar_lea.sflag [#allocation3], 1
    %1426 = vsyncpa %s1425, 1
    %1427 = vsyncpa [#allocation5], 1
    %s1428 = scalar_lea.sflag [#allocation5], 1
    %1429 = vsyncpa %s1428, 1
    %1430 = vsyncpa [#allocation8], 1
    %s1431 = scalar_lea.sflag [#allocation8], 1
    %1432 = vsyncpa %s1431, 1

</llo_original>
